<compile_context>
chip_gen: v7x
topology: tpu7x:2x2x1
jax: 0.10.0
libtpu: 0.0.40
codegen_flags: <defaults>
</compile_context>

<pallas_src>
import functools

import jax
import jax.numpy as jnp
from jax import lax
from jax.experimental import pallas as pl
from jax.experimental.pallas import tpu as pltpu


def _round_up(x, m):
    return ((x + m - 1) // m) * m


def _pick_vmem_limit():
    cap = 64 * 1024 * 1024  # conservative fallback (v7x-sized VMEM)
    try:
        cap = int(pltpu.get_tpu_info().vmem_capacity_bytes)
    except Exception:
        pass
    # 128 MiB parts (v5e/v6e) -> 64 MiB budget; 64 MiB parts (v7x) -> 40 MiB.
    return max(32 * 1024 * 1024, min(64 * 1024 * 1024, cap - 24 * 1024 * 1024))


def cross_attn_kernel(hs_ref, ehs_ref, wq_ref, wk_ref, wv_ref, wo_ref, bo_ref,
                      out_ref, k_sc, v_sc, *, heads, dim_head, skv, skv_pad,
                      compute_dtype):
    cd = compute_dtype
    f32 = jnp.float32

    # K/V projections: computed once per batch index and cached in VMEM
    # scratch (query-tile grid axis is sequential per core).
    @pl.when(pl.program_id(1) == 0)
    def _():
        ehs = ehs_ref[0]                                           # (skv_pad, Dc)
        k_sc[...] = jnp.dot(ehs, wk_ref[...],
                            preferred_element_type=f32).astype(cd)
        v_sc[...] = jnp.dot(ehs, wv_ref[...],
                            preferred_element_type=f32).astype(cd)

    hs = hs_ref[0]                                                 # (tq, Dq)
    # to_q (bias=False); 1/sqrt(dim_head) already folded into Wq.
    q = jnp.dot(hs, wq_ref[...], preferred_element_type=f32).astype(cd)

    tq = q.shape[0]
    if skv_pad != skv:
        # Additive -inf bias for the zero-padded key columns (built once,
        # shared by all heads).  Scores are accumulated in f32 so -1e30 is safe.
        col = lax.broadcasted_iota(jnp.int32, (tq, skv_pad), 1)
        neg_bias = jnp.where(col < skv, 0.0, -1e30).astype(f32)
    else:
        neg_bias = None

    use_approx = cd != jnp.float32
    dq_pad = out_ref.shape[-1]
    acc = jnp.zeros((tq, dq_pad), f32)

    for h in range(heads):                     # static unroll; heads is small
        sl = slice(h * dim_head, (h + 1) * dim_head)
        q_h = q[:, sl]
        k_h = k_sc[:, sl]                      # cached (skv_pad, dh)
        v_h = v_sc[:, sl]

        # scores = (scale*Q_h) @ K_h^T without materializing a transpose.
        s = lax.dot_general(q_h, k_h, (((1,), (1,)), ((), ())),
                            preferred_element_type=f32)            # (tq, skv_pad)
        if neg_bias is not None:
            s = s + neg_bias

        # Row softmax in f32; normalization deferred past the PV matmul.
        m = jnp.max(s, axis=-1, keepdims=True)
        p = jnp.exp(s - m)
        denom = jnp.sum(p, axis=-1, keepdims=True)
        pv = jnp.dot(p.astype(cd), v_h, preferred_element_type=f32)  # (tq, dh)
        if use_approx:
            attn = pv * pl.reciprocal(denom, approx=True)
        else:
            attn = pv / denom

        # Per-head accumulation into the output projection (to_out[0]):
        # Wo row-slices are cheap sublane slices; accumulator stays lane-dense.
        acc = acc + jnp.dot(attn.astype(cd), wo_ref[sl, :],
                            preferred_element_type=f32)

    out_ref[0] = (acc + bo_ref[...]).astype(out_ref.dtype)


def cross_attention_pallas(hidden_states, encoder_hidden_states,
                           w_q, w_k, w_v, w_o, b_o, *,
                           heads, dim_head, tq=None,
                           compute_dtype=jnp.bfloat16):
    """hidden_states: (B, Sq, query_dim); encoder_hidden_states: (B, Skv, cross_dim)
    or None (self-attention path of the module).  Weights are in PyTorch
    nn.Linear layout (out_features, in_features)."""
    if encoder_hidden_states is None:
        encoder_hidden_states = hidden_states

    B, Sq, Dq = hidden_states.shape
    _, Skv, Dc = encoder_hidden_states.shape
    inner_dim = heads * dim_head
    assert w_q.shape == (inner_dim, Dq)
    assert w_k.shape == (inner_dim, Dc)
    assert w_v.shape == (inner_dim, Dc)
    assert w_o.shape == (Dq, inner_dim)

    out_dtype = hidden_states.dtype
    cd = compute_dtype
    scale = float(dim_head) ** (-0.5)

    # Transposed (in, out) weight layouts in the MXU compute dtype; scale folded.
    wq_t = (w_q.T * scale).astype(cd)          # (Dq, inner)
    wk_t = w_k.T.astype(cd)                    # (Dc, inner)
    wv_t = w_v.T.astype(cd)                    # (Dc, inner)

    # Pad the output channel dim to a 128-lane multiple (lane-dense stores).
    dq_pad = _round_up(Dq, 128)
    wo_t = w_o.T.astype(cd)                    # (inner, Dq)
    if dq_pad != Dq:
        wo_t = jnp.pad(wo_t, ((0, 0), (0, dq_pad - Dq)))
        bo2 = jnp.pad(b_o, (0, dq_pad - Dq)).reshape(1, dq_pad).astype(jnp.float32)
    else:
        bo2 = b_o.reshape(1, dq_pad).astype(jnp.float32)

    # Activations are DMA'd in the compute dtype (halves HBM traffic for bf16).
    hs = hidden_states.astype(cd)
    ehs = encoder_hidden_states.astype(cd)

    # Pad the key/value sequence to a 128-lane multiple (masked in-kernel).
    skv_pad = _round_up(Skv, 128)
    if skv_pad != Skv:
        ehs = jnp.pad(ehs, ((0, 0), (0, skv_pad - Skv), (0, 0)))

    vmem_limit = _pick_vmem_limit()
    if tq is None:
        tq = 512 if vmem_limit >= 56 * 1024 * 1024 else 256
    tq = min(tq, Sq)
    if tq != Sq and tq % 8 != 0:
        tq = max(8, (tq // 8) * 8)
    n_qt = pl.cdiv(Sq, tq)

    kernel = functools.partial(
        cross_attn_kernel, heads=heads, dim_head=dim_head,
        skv=Skv, skv_pad=skv_pad, compute_dtype=cd)

    # Resident operands (constant index_map): no benefit from double-buffering.
    resident = pl.Buffered(1)

    grid_spec = pltpu.PrefetchScalarGridSpec(
        num_scalar_prefetch=0,
        grid=(B, n_qt),
        in_specs=[
            pl.BlockSpec((1, tq, Dq), lambda b, t: (b, t, 0)),       # hs tile
            pl.BlockSpec((1, skv_pad, Dc), lambda b, t: (b, 0, 0)),  # ehs (per batch)
            pl.BlockSpec((Dq, inner_dim), lambda b, t: (0, 0),
                         pipeline_mode=resident),                   # Wq^T
            pl.BlockSpec((Dc, inner_dim), lambda b, t: (0, 0),
                         pipeline_mode=resident),                   # Wk^T
            pl.BlockSpec((Dc, inner_dim), lambda b, t: (0, 0),
                         pipeline_mode=resident),                   # Wv^T
            pl.BlockSpec((inner_dim, dq_pad), lambda b, t: (0, 0),
                         pipeline_mode=resident),                   # Wo^T (padded)
            pl.BlockSpec((1, dq_pad), lambda b, t: (0, 0),
                         pipeline_mode=resident),                   # to_out bias
        ],
        out_specs=pl.BlockSpec((1, tq, dq_pad), lambda b, t: (b, t, 0)),
        scratch_shapes=[pltpu.VMEM((skv_pad, inner_dim), cd),        # cached K
                        pltpu.VMEM((skv_pad, inner_dim), cd)],       # cached V
    )

    out = pl.pallas_call(
        kernel,
        out_shape=jax.ShapeDtypeStruct((B, Sq, dq_pad), out_dtype),
        grid_spec=grid_spec,
        compiler_params=pltpu.CompilerParams(
            # Batch is megacore-parallel; the query-tile axis must stay
            # sequential per core so the t==0-guarded K/V cache is valid.
            dimension_semantics=("parallel", "arbitrary"),
            vmem_limit_bytes=vmem_limit),
    )(hs, ehs, wq_t, wk_t, wv_t, wo_t, bo2)

    return out[..., :Dq] if dq_pad != Dq else out


def cross_attention_ref(hidden_states, encoder_hidden_states,
                        w_q, w_k, w_v, w_o, b_o, *, heads, dim_head):
    """Pure-JAX reference mirroring the PyTorch forward (default path)."""
    if encoder_hidden_states is None:
        encoder_hidden_states = hidden_states
    B, Sq, Dq = hidden_states.shape
    scale = float(dim_head) ** (-0.5)
    q = hidden_states @ w_q.T                 # (B, Sq, inner)
    k = encoder_hidden_states @ w_k.T         # (B, Skv, inner)
    v = encoder_hidden_states @ w_v.T

    def to_heads(t):
        b, s, d = t.shape
        return t.reshape(b, s, heads, d // heads).transpose(0, 2, 1, 3) \
                .reshape(b * heads, s, d // heads)

    q, k, v = to_heads(q), to_heads(k), to_heads(v)
    scores = scale * jnp.einsum('bqd,bkd->bqk', q, k)
    probs = jax.nn.softmax(scores, axis=-1)
    out = jnp.einsum('bqk,bkd->bqd', probs, v)              # (B*H, Sq, dh)
    out = out.reshape(B, heads, Sq, dim_head).transpose(0, 2, 1, 3) \
             .reshape(B, Sq, heads * dim_head)
    return out @ w_o.T + b_o                                # dropout p=0 -> identity


if __name__ == "__main__":
    # Small shapes consistent with the module.
    B, Sq, Skv = 2, 16, 8
    query_dim, cross_dim = 32, 32
    heads, dim_head = 4, 8
    inner_dim = heads * dim_head

    key = jax.random.PRNGKey(0)
    k_hs, k_ehs, k_q, k_k, k_v, k_o, k_b = jax.random.split(key, 7)

    hidden_states = jax.random.normal(k_hs, (B, Sq, query_dim), jnp.float32)
    encoder_hidden_states = jax.random.normal(k_ehs, (B, Skv, cross_dim), jnp.float32)

    # Deterministic synthetic parameters (PyTorch nn.Linear layout: (out, in)).
    w_q = 0.1 * jax.random.normal(k_q, (inner_dim, query_dim), jnp.float32)
    w_k = 0.1 * jax.random.normal(k_k, (inner_dim, cross_dim), jnp.float32)
    w_v = 0.1 * jax.random.normal(k_v, (inner_dim, cross_dim), jnp.float32)
    w_o = 0.1 * jax.random.normal(k_o, (query_dim, inner_dim), jnp.float32)
    b_o = 0.1 * jax.random.normal(k_b, (query_dim,), jnp.float32)

    # ---- cross-attention, f32 compute path (bit-faithful) ----
    ref = cross_attention_ref(hidden_states, encoder_hidden_states,
                              w_q, w_k, w_v, w_o, b_o,
                              heads=heads, dim_head=dim_head)
    out_f32 = cross_attention_pallas(hidden_states, encoder_hidden_states,
                                     w_q, w_k, w_v, w_o, b_o,
                                     heads=heads, dim_head=dim_head,
                                     compute_dtype=jnp.float32)
    out_f32 = jax.block_until_ready(out_f32)
    assert out_f32.shape == (B, Sq, query_dim)
    assert jnp.allclose(out_f32, ref, atol=1e-4, rtol=1e-4), \
        f"f32 path max abs err {jnp.max(jnp.abs(out_f32 - ref))}"

    # ---- multiple query tiles (exercises the cached-K/V path, t==0 guard) ----
    out_tiled = cross_attention_pallas(hidden_states, encoder_hidden_states,
                                       w_q, w_k, w_v, w_o, b_o,
                                       heads=heads, dim_head=dim_head,
                                       tq=8, compute_dtype=jnp.float32)
    out_tiled = jax.block_until_ready(out_tiled)
    assert jnp.allclose(out_tiled, ref, atol=1e-4, rtol=1e-4), \
        f"tiled f32 path max abs err {jnp.max(jnp.abs(out_tiled - ref))}"

    # ---- cross-attention, default bf16-operand path (MXU-friendly) ----
    out_bf16 = cross_attention_pallas(hidden_states, encoder_hidden_states,
                                      w_q, w_k, w_v, w_o, b_o,
                                      heads=heads, dim_head=dim_head,
                                      compute_dtype=jnp.bfloat16)
    out_bf16 = jax.block_until_ready(out_bf16)
    assert jnp.allclose(out_bf16, ref, atol=5e-2, rtol=5e-2), \
        f"bf16 path max abs err {jnp.max(jnp.abs(out_bf16 - ref))}"

    # ---- self-attention path (encoder_hidden_states=None) ----
    ref_self = cross_attention_ref(hidden_states, None,
                                   w_q, w_k, w_v, w_o, b_o,
                                   heads=heads, dim_head=dim_head)
    out_self = cross_attention_pallas(hidden_states, None,
                                      w_q, w_k, w_v, w_o, b_o,
                                      heads=heads, dim_head=dim_head,
                                      tq=8, compute_dtype=jnp.float32)
    out_self = jax.block_until_ready(out_self)
    assert jnp.allclose(out_self, ref_self, atol=1e-4, rtol=1e-4), \
        f"self-attn path max abs err {jnp.max(jnp.abs(out_self - ref_self))}"

    # TODO(synk): group_norm / added_kv_proj / attention_mask / rotary branches
    # are not exercised by the default config and are left unimplemented.
    print("KERNEL_OK")
</pallas_src>

<mosaic_0001>
module attributes {stable_mosaic.version = 11 : i64} {
  func.func @cross_attn_kernel(%arg0: i32, %arg1: i32, %arg2: memref<1x16x32xf32, #tpu.memory_space<vmem>>, %arg3: memref<1x128x32xf32, #tpu.memory_space<vmem>>, %arg4: memref<32x32xf32, #tpu.memory_space<vmem>>, %arg5: memref<32x32xf32, #tpu.memory_space<vmem>>, %arg6: memref<32x32xf32, #tpu.memory_space<vmem>>, %arg7: memref<32x128xf32, #tpu.memory_space<vmem>>, %arg8: memref<1x128xf32, #tpu.memory_space<vmem>>, %arg9: memref<1x16x128xf32, #tpu.memory_space<vmem>>, %arg10: memref<128x32xf32, #tpu.memory_space<vmem>>, %arg11: memref<128x32xf32, #tpu.memory_space<vmem>>) attributes {dimension_semantics = [#tpu.dimension_semantics<parallel>, #tpu.dimension_semantics<arbitrary>], iteration_bounds = array<i64: 2, 1>, scalar_prefetch = 0 : i64, scratch_operands = 2 : i64, tpu.core_type = #tpu.core_type<tc>, window_params = [{transform_indices = @transform_0, window_bounds = array<i64: 1, 16, 32>}, {transform_indices = @transform_1, window_bounds = array<i64: 1, 128, 32>}, {pipeline_mode = #tpu.pipeline_mode<synchronous>, transform_indices = @transform_2, window_bounds = array<i64: 32, 32>}, {pipeline_mode = #tpu.pipeline_mode<synchronous>, transform_indices = @transform_3, window_bounds = array<i64: 32, 32>}, {pipeline_mode = #tpu.pipeline_mode<synchronous>, transform_indices = @transform_4, window_bounds = array<i64: 32, 32>}, {pipeline_mode = #tpu.pipeline_mode<synchronous>, transform_indices = @transform_5, window_bounds = array<i64: 32, 128>}, {pipeline_mode = #tpu.pipeline_mode<synchronous>, transform_indices = @transform_6, window_bounds = array<i64: 1, 128>}, {transform_indices = @transform_7, window_bounds = array<i64: 1, 16, 128>}]} {
    %c0_i32 = arith.constant 0 : i32
    %0 = arith.cmpi eq, %arg1, %c0_i32 : i32
    %1 = arith.extui %0 : i1 to i32
    %c0_i32_0 = arith.constant 0 : i32
    %2 = arith.cmpi ne, %1, %c0_i32_0 : i32
    scf.if %2 {
      %c0_54 = arith.constant 0 : index
      %c0_55 = arith.constant 0 : index
      %c0_56 = arith.constant 0 : index
      %92 = vector.load %arg3[%c0_54, %c0_55, %c0_56] : memref<1x128x32xf32, #tpu.memory_space<vmem>>, vector<1x128x32xf32>
      %93 = vector.shape_cast %92 : vector<1x128x32xf32> to vector<128x32xf32>
      %c0_57 = arith.constant 0 : index
      %c0_58 = arith.constant 0 : index
      %94 = vector.load %arg5[%c0_57, %c0_58] : memref<32x32xf32, #tpu.memory_space<vmem>>, vector<32x32xf32>
      %cst_59 = arith.constant dense<0.000000e+00> : vector<128x32xf32>
      %95 = tpu.matmul %93, %94, %cst_59 {dimension_numbers = #tpu.dot_dimension_numbers<[1], [0], [0], [1], [0, 0, 1, 1], [], []>} : vector<128x32xf32>, vector<32x32xf32>, vector<128x32xf32> -> vector<128x32xf32>
      %c0_60 = arith.constant 0 : index
      %c0_61 = arith.constant 0 : index
      %96 = vector.load %arg10[%c0_60, %c0_61] : memref<128x32xf32, #tpu.memory_space<vmem>>, vector<128x32xf32>
      tpu.vector_store %arg10[%c0_60, %c0_61], %95 {strides = array<i32>} : memref<128x32xf32, #tpu.memory_space<vmem>>, vector<128x32xf32>,
      %c0_62 = arith.constant 0 : index
      %c0_63 = arith.constant 0 : index
      %97 = vector.load %arg6[%c0_62, %c0_63] : memref<32x32xf32, #tpu.memory_space<vmem>>, vector<32x32xf32>
      %cst_64 = arith.constant dense<0.000000e+00> : vector<128x32xf32>
      %98 = tpu.matmul %93, %97, %cst_64 {dimension_numbers = #tpu.dot_dimension_numbers<[1], [0], [0], [1], [0, 0, 1, 1], [], []>} : vector<128x32xf32>, vector<32x32xf32>, vector<128x32xf32> -> vector<128x32xf32>
      %c0_65 = arith.constant 0 : index
      %c0_66 = arith.constant 0 : index
      %99 = vector.load %arg11[%c0_65, %c0_66] : memref<128x32xf32, #tpu.memory_space<vmem>>, vector<128x32xf32>
      tpu.vector_store %arg11[%c0_65, %c0_66], %98 {strides = array<i32>} : memref<128x32xf32, #tpu.memory_space<vmem>>, vector<128x32xf32>,
    } else {
    }
    %c0 = arith.constant 0 : index
    %c0_1 = arith.constant 0 : index
    %c0_2 = arith.constant 0 : index
    %3 = vector.load %arg2[%c0, %c0_1, %c0_2] : memref<1x16x32xf32, #tpu.memory_space<vmem>>, vector<1x16x32xf32>
    %4 = vector.shape_cast %3 : vector<1x16x32xf32> to vector<16x32xf32>
    %c0_3 = arith.constant 0 : index
    %c0_4 = arith.constant 0 : index
    %5 = vector.load %arg4[%c0_3, %c0_4] : memref<32x32xf32, #tpu.memory_space<vmem>>, vector<32x32xf32>
    %cst = arith.constant dense<0.000000e+00> : vector<16x32xf32>
    %6 = tpu.matmul %4, %5, %cst {dimension_numbers = #tpu.dot_dimension_numbers<[1], [0], [0], [1], [0, 0, 1, 1], [], []>} : vector<16x32xf32>, vector<32x32xf32>, vector<16x32xf32> -> vector<16x32xf32>
    %7 = tpu.iota {dimensions = array<i32: 1>} : vector<16x128xi32>
    %c8_i32 = arith.constant 8 : i32
    %8 = vector.broadcast %c8_i32 : i32 to vector<16x128xi32>
    %9 = arith.cmpi slt, %7, %8 : vector<16x128xi32>
    %cst_5 = arith.constant 0.000000e+00 : f32
    %cst_6 = arith.constant -1.000000e+30 : f32
    %10 = vector.broadcast %cst_5 : f32 to vector<16x128xf32>
    %11 = vector.broadcast %cst_6 : f32 to vector<16x128xf32>
    %12 = arith.select %9, %10, %11 : vector<16x128xi1>, vector<16x128xf32>
    %cst_7 = arith.constant 0.000000e+00 : f32
    %13 = vector.broadcast %cst_7 : f32 to vector<16x128xf32>
    %14 = vector.extract_strided_slice %6 {offsets = [0, 0], sizes = [16, 8], strides = [1, 1]} : vector<16x32xf32> to vector<16x8xf32>
    %c0_8 = arith.constant 0 : index
    %c0_9 = arith.constant 0 : index
    %15 = vector.load %arg10[%c0_8, %c0_9] : memref<128x32xf32, #tpu.memory_space<vmem>>, vector<128x8xf32>
    %c0_10 = arith.constant 0 : index
    %c0_11 = arith.constant 0 : index
    %16 = vector.load %arg11[%c0_10, %c0_11] : memref<128x32xf32, #tpu.memory_space<vmem>>, vector<128x8xf32>
    %cst_12 = arith.constant dense<0.000000e+00> : vector<16x128xf32>
    %17 = tpu.matmul %14, %15, %cst_12 {dimension_numbers = #tpu.dot_dimension_numbers<[1], [1], [0], [0], [0, 0, 1, 0], [], []>} : vector<16x8xf32>, vector<128x8xf32>, vector<16x128xf32> -> vector<16x128xf32>
    %18 = arith.addf %17, %12 : vector<16x128xf32>
    %cst_13 = arith.constant dense<0xFF800000> : vector<16xf32>
    %19 = vector.multi_reduction <maximumf>, %18, %cst_13 [1] : vector<16x128xf32> to vector<16xf32>
    %20 = vector.shape_cast %19 : vector<16xf32> to vector<16x1xf32>
    %21 = vector.broadcast %20 : vector<16x1xf32> to vector<16x128xf32>
    %22 = arith.subf %18, %21 : vector<16x128xf32>
    %23 = math.exp %22 : vector<16x128xf32>
    %cst_14 = arith.constant dense<0.000000e+00> : vector<16xf32>
    %24 = vector.multi_reduction <add>, %23, %cst_14 [1] : vector<16x128xf32> to vector<16xf32>
    %25 = vector.shape_cast %24 : vector<16xf32> to vector<16x1xf32>
    %cst_15 = arith.constant dense<0.000000e+00> : vector<16x8xf32>
    %26 = tpu.matmul %23, %16, %cst_15 {dimension_numbers = #tpu.dot_dimension_numbers<[1], [0], [0], [1], [0, 0, 1, 1], [], []>} : vector<16x128xf32>, vector<128x8xf32>, vector<16x8xf32> -> vector<16x8xf32>
    %27 = vector.broadcast %25 : vector<16x1xf32> to vector<16x8xf32>
    %28 = arith.divf %26, %27 : vector<16x8xf32>
    %c0_16 = arith.constant 0 : index
    %c0_17 = arith.constant 0 : index
    %29 = vector.load %arg7[%c0_16, %c0_17] : memref<32x128xf32, #tpu.memory_space<vmem>>, vector<8x128xf32>
    %cst_18 = arith.constant dense<0.000000e+00> : vector<16x128xf32>
    %30 = tpu.matmul %28, %29, %cst_18 {dimension_numbers = #tpu.dot_dimension_numbers<[1], [0], [0], [1], [0, 0, 1, 1], [], []>} : vector<16x8xf32>, vector<8x128xf32>, vector<16x128xf32> -> vector<16x128xf32>
    %31 = arith.addf %13, %30 : vector<16x128xf32>
    %32 = vector.extract_strided_slice %6 {offsets = [0, 8], sizes = [16, 8], strides = [1, 1]} : vector<16x32xf32> to vector<16x8xf32>
    %c0_19 = arith.constant 0 : index
    %c8 = arith.constant 8 : index
    %33 = vector.load %arg10[%c0_19, %c8] : memref<128x32xf32, #tpu.memory_space<vmem>>, vector<128x8xf32>
    %c0_20 = arith.constant 0 : index
    %c8_21 = arith.constant 8 : index
    %34 = vector.load %arg11[%c0_20, %c8_21] : memref<128x32xf32, #tpu.memory_space<vmem>>, vector<128x8xf32>
    %cst_22 = arith.constant dense<0.000000e+00> : vector<16x128xf32>
    %35 = tpu.matmul %32, %33, %cst_22 {dimension_numbers = #tpu.dot_dimension_numbers<[1], [1], [0], [0], [0, 0, 1, 0], [], []>} : vector<16x8xf32>, vector<128x8xf32>, vector<16x128xf32> -> vector<16x128xf32>
    %36 = arith.addf %35, %12 : vector<16x128xf32>
    %cst_23 = arith.constant dense<0xFF800000> : vector<16xf32>
    %37 = vector.multi_reduction <maximumf>, %36, %cst_23 [1] : vector<16x128xf32> to vector<16xf32>
    %38 = vector.shape_cast %37 : vector<16xf32> to vector<16x1xf32>
    %39 = vector.broadcast %38 : vector<16x1xf32> to vector<16x128xf32>
    %40 = arith.subf %36, %39 : vector<16x128xf32>
    %41 = math.exp %40 : vector<16x128xf32>
    %cst_24 = arith.constant dense<0.000000e+00> : vector<16xf32>
    %42 = vector.multi_reduction <add>, %41, %cst_24 [1] : vector<16x128xf32> to vector<16xf32>
    %43 = vector.shape_cast %42 : vector<16xf32> to vector<16x1xf32>
    %cst_25 = arith.constant dense<0.000000e+00> : vector<16x8xf32>
    %44 = tpu.matmul %41, %34, %cst_25 {dimension_numbers = #tpu.dot_dimension_numbers<[1], [0], [0], [1], [0, 0, 1, 1], [], []>} : vector<16x128xf32>, vector<128x8xf32>, vector<16x8xf32> -> vector<16x8xf32>
    %45 = vector.broadcast %43 : vector<16x1xf32> to vector<16x8xf32>
    %46 = arith.divf %44, %45 : vector<16x8xf32>
    %c8_26 = arith.constant 8 : index
    %c0_27 = arith.constant 0 : index
    %47 = vector.load %arg7[%c8_26, %c0_27] : memref<32x128xf32, #tpu.memory_space<vmem>>, vector<8x128xf32>
    %cst_28 = arith.constant dense<0.000000e+00> : vector<16x128xf32>
    %48 = tpu.matmul %46, %47, %cst_28 {dimension_numbers = #tpu.dot_dimension_numbers<[1], [0], [0], [1], [0, 0, 1, 1], [], []>} : vector<16x8xf32>, vector<8x128xf32>, vector<16x128xf32> -> vector<16x128xf32>
    %49 = arith.addf %31, %48 : vector<16x128xf32>
    %50 = vector.extract_strided_slice %6 {offsets = [0, 16], sizes = [16, 8], strides = [1, 1]} : vector<16x32xf32> to vector<16x8xf32>
    %c0_29 = arith.constant 0 : index
    %c16 = arith.constant 16 : index
    %51 = vector.load %arg10[%c0_29, %c16] : memref<128x32xf32, #tpu.memory_space<vmem>>, vector<128x8xf32>
    %c0_30 = arith.constant 0 : index
    %c16_31 = arith.constant 16 : index
    %52 = vector.load %arg11[%c0_30, %c16_31] : memref<128x32xf32, #tpu.memory_space<vmem>>, vector<128x8xf32>
    %cst_32 = arith.constant dense<0.000000e+00> : vector<16x128xf32>
    %53 = tpu.matmul %50, %51, %cst_32 {dimension_numbers = #tpu.dot_dimension_numbers<[1], [1], [0], [0], [0, 0, 1, 0], [], []>} : vector<16x8xf32>, vector<128x8xf32>, vector<16x128xf32> -> vector<16x128xf32>
    %54 = arith.addf %53, %12 : vector<16x128xf32>
    %cst_33 = arith.constant dense<0xFF800000> : vector<16xf32>
    %55 = vector.multi_reduction <maximumf>, %54, %cst_33 [1] : vector<16x128xf32> to vector<16xf32>
    %56 = vector.shape_cast %55 : vector<16xf32> to vector<16x1xf32>
    %57 = vector.broadcast %56 : vector<16x1xf32> to vector<16x128xf32>
    %58 = arith.subf %54, %57 : vector<16x128xf32>
    %59 = math.exp %58 : vector<16x128xf32>
    %cst_34 = arith.constant dense<0.000000e+00> : vector<16xf32>
    %60 = vector.multi_reduction <add>, %59, %cst_34 [1] : vector<16x128xf32> to vector<16xf32>
    %61 = vector.shape_cast %60 : vector<16xf32> to vector<16x1xf32>
    %cst_35 = arith.constant dense<0.000000e+00> : vector<16x8xf32>
    %62 = tpu.matmul %59, %52, %cst_35 {dimension_numbers = #tpu.dot_dimension_numbers<[1], [0], [0], [1], [0, 0, 1, 1], [], []>} : vector<16x128xf32>, vector<128x8xf32>, vector<16x8xf32> -> vector<16x8xf32>
    %63 = vector.broadcast %61 : vector<16x1xf32> to vector<16x8xf32>
    %64 = arith.divf %62, %63 : vector<16x8xf32>
    %c16_36 = arith.constant 16 : index
    %c0_37 = arith.constant 0 : index
    %65 = vector.load %arg7[%c16_36, %c0_37] : memref<32x128xf32, #tpu.memory_space<vmem>>, vector<8x128xf32>
    %cst_38 = arith.constant dense<0.000000e+00> : vector<16x128xf32>
    %66 = tpu.matmul %64, %65, %cst_38 {dimension_numbers = #tpu.dot_dimension_numbers<[1], [0], [0], [1], [0, 0, 1, 1], [], []>} : vector<16x8xf32>, vector<8x128xf32>, vector<16x128xf32> -> vector<16x128xf32>
    %67 = arith.addf %49, %66 : vector<16x128xf32>
    %68 = vector.extract_strided_slice %6 {offsets = [0, 24], sizes = [16, 8], strides = [1, 1]} : vector<16x32xf32> to vector<16x8xf32>
    %c0_39 = arith.constant 0 : index
    %c24 = arith.constant 24 : index
    %69 = vector.load %arg10[%c0_39, %c24] : memref<128x32xf32, #tpu.memory_space<vmem>>, vector<128x8xf32>
    %c0_40 = arith.constant 0 : index
    %c24_41 = arith.constant 24 : index
    %70 = vector.load %arg11[%c0_40, %c24_41] : memref<128x32xf32, #tpu.memory_space<vmem>>, vector<128x8xf32>
    %cst_42 = arith.constant dense<0.000000e+00> : vector<16x128xf32>
    %71 = tpu.matmul %68, %69, %cst_42 {dimension_numbers = #tpu.dot_dimension_numbers<[1], [1], [0], [0], [0, 0, 1, 0], [], []>} : vector<16x8xf32>, vector<128x8xf32>, vector<16x128xf32> -> vector<16x128xf32>
    %72 = arith.addf %71, %12 : vector<16x128xf32>
    %cst_43 = arith.constant dense<0xFF800000> : vector<16xf32>
    %73 = vector.multi_reduction <maximumf>, %72, %cst_43 [1] : vector<16x128xf32> to vector<16xf32>
    %74 = vector.shape_cast %73 : vector<16xf32> to vector<16x1xf32>
    %75 = vector.broadcast %74 : vector<16x1xf32> to vector<16x128xf32>
    %76 = arith.subf %72, %75 : vector<16x128xf32>
    %77 = math.exp %76 : vector<16x128xf32>
    %cst_44 = arith.constant dense<0.000000e+00> : vector<16xf32>
    %78 = vector.multi_reduction <add>, %77, %cst_44 [1] : vector<16x128xf32> to vector<16xf32>
    %79 = vector.shape_cast %78 : vector<16xf32> to vector<16x1xf32>
    %cst_45 = arith.constant dense<0.000000e+00> : vector<16x8xf32>
    %80 = tpu.matmul %77, %70, %cst_45 {dimension_numbers = #tpu.dot_dimension_numbers<[1], [0], [0], [1], [0, 0, 1, 1], [], []>} : vector<16x128xf32>, vector<128x8xf32>, vector<16x8xf32> -> vector<16x8xf32>
    %81 = vector.broadcast %79 : vector<16x1xf32> to vector<16x8xf32>
    %82 = arith.divf %80, %81 : vector<16x8xf32>
    %c24_46 = arith.constant 24 : index
    %c0_47 = arith.constant 0 : index
    %83 = vector.load %arg7[%c24_46, %c0_47] : memref<32x128xf32, #tpu.memory_space<vmem>>, vector<8x128xf32>
    %cst_48 = arith.constant dense<0.000000e+00> : vector<16x128xf32>
    %84 = tpu.matmul %82, %83, %cst_48 {dimension_numbers = #tpu.dot_dimension_numbers<[1], [0], [0], [1], [0, 0, 1, 1], [], []>} : vector<16x8xf32>, vector<8x128xf32>, vector<16x128xf32> -> vector<16x128xf32>
    %85 = arith.addf %67, %84 : vector<16x128xf32>
    %c0_49 = arith.constant 0 : index
    %c0_50 = arith.constant 0 : index
    %86 = vector.load %arg8[%c0_49, %c0_50] : memref<1x128xf32, #tpu.memory_space<vmem>>, vector<1x128xf32>
    %87 = vector.broadcast %86 : vector<1x128xf32> to vector<16x128xf32>
    %88 = arith.addf %85, %87 : vector<16x128xf32>
    %c0_51 = arith.constant 0 : index
    %c0_52 = arith.constant 0 : index
    %c0_53 = arith.constant 0 : index
    %89 = vector.load %arg9[%c0_51, %c0_52, %c0_53] : memref<1x16x128xf32, #tpu.memory_space<vmem>>, vector<1x16x128xf32>
    %90 = vector.shape_cast %89 : vector<1x16x128xf32> to vector<16x128xf32>
    %91 = vector.shape_cast %88 : vector<16x128xf32> to vector<1x16x128xf32>
    tpu.vector_store %arg9[%c0_51, %c0_52, %c0_53], %91 {strides = array<i32>} : memref<1x16x128xf32, #tpu.memory_space<vmem>>, vector<1x16x128xf32>,
    return
  }
  func.func @transform_0(%arg0: i32, %arg1: i32) -> (i32, i32, i32) {
    %c0_i32 = arith.constant 0 : i32
    %c0_i32_0 = arith.constant 0 : i32
    return %arg0, %arg1, %c0_i32 : i32, i32, i32
  }
  func.func @transform_1(%arg0: i32, %arg1: i32) -> (i32, i32, i32) {
    %c0_i32 = arith.constant 0 : i32
    %c0_i32_0 = arith.constant 0 : i32
    %c0_i32_1 = arith.constant 0 : i32
    return %arg0, %c0_i32, %c0_i32_0 : i32, i32, i32
  }
  func.func @transform_2(%arg0: i32, %arg1: i32) -> (i32, i32) {
    %c0_i32 = arith.constant 0 : i32
    %c0_i32_0 = arith.constant 0 : i32
    %c0_i32_1 = arith.constant 0 : i32
    return %c0_i32, %c0_i32_0 : i32, i32
  }
  func.func @transform_3(%arg0: i32, %arg1: i32) -> (i32, i32) {
    %c0_i32 = arith.constant 0 : i32
    %c0_i32_0 = arith.constant 0 : i32
    %c0_i32_1 = arith.constant 0 : i32
    return %c0_i32, %c0_i32_0 : i32, i32
  }
  func.func @transform_4(%arg0: i32, %arg1: i32) -> (i32, i32) {
    %c0_i32 = arith.constant 0 : i32
    %c0_i32_0 = arith.constant 0 : i32
    %c0_i32_1 = arith.constant 0 : i32
    return %c0_i32, %c0_i32_0 : i32, i32
  }
  func.func @transform_5(%arg0: i32, %arg1: i32) -> (i32, i32) {
    %c0_i32 = arith.constant 0 : i32
    %c0_i32_0 = arith.constant 0 : i32
    %c0_i32_1 = arith.constant 0 : i32
    return %c0_i32, %c0_i32_0 : i32, i32
  }
  func.func @transform_6(%arg0: i32, %arg1: i32) -> (i32, i32) {
    %c0_i32 = arith.constant 0 : i32
    %c0_i32_0 = arith.constant 0 : i32
    %c0_i32_1 = arith.constant 0 : i32
    return %c0_i32, %c0_i32_0 : i32, i32
  }
  func.func @transform_7(%arg0: i32, %arg1: i32) -> (i32, i32, i32) {
    %c0_i32 = arith.constant 0 : i32
    %c0_i32_0 = arith.constant 0 : i32
    return %arg0, %arg1, %c0_i32 : i32, i32, i32
  }
}

</mosaic_0001>

<llo_original>
// kernel: tpu_custom_call.1
$region0: #{tpu_custom_call.1}
  #allocation0 [shape = 'u32[]', space=smem, size = 0x4, offset = 0x4, fixed_abs, tag = 'smem constant byte address 0x4 - core index']
  #allocation1 [shape = 'u32[144,128]{1,0:T(1,128)}', space=vmem, size = 0x12000, scoped, tag = 'internal scratch']
  #allocation2 [shape = 'f32[128,32]{1,0:T(8,128)}', space=vmem, size = 0x10000, scoped, tag = 'scratch operand']
  #allocation3 [shape = 'f32[128,32]{1,0:T(8,128)}', space=vmem, size = 0x10000, scoped, tag = 'scratch operand']
  %s0 = inlined_call_operand.vmem [shape: f32[2,16,32], index: 0, kind: input, shape index: {}]
  %s1 = inlined_call_operand.vmem [shape: f32[2,128,32], index: 1, kind: input, shape index: {}]
  %s2 = inlined_call_operand.vmem [shape: f32[32,32], index: 2, kind: input, shape index: {}]
  %s3 = inlined_call_operand.vmem [shape: f32[32,32], index: 3, kind: input, shape index: {}]
  %s4 = inlined_call_operand.vmem [shape: f32[32,32], index: 4, kind: input, shape index: {}]
  %s5 = inlined_call_operand.vmem [shape: f32[32,128], index: 5, kind: input, shape index: {}]
  %s6 = inlined_call_operand.vmem [shape: f32[1,128], index: 6, kind: input, shape index: {}]
  %s7 = inlined_call_operand.hbm [shape: f32[2,16,128], index: 7, kind: output, shape index: {}]
  %s8 = sld [smem:[#allocation0]]
  $region65: #{tpu_custom_call.1} parent=0
    _
  %s10 = ssub.s32 1, %s8
  %s11 = scalar_select 0, %s10, %s8
  $region1: #{tpu_custom_call.1} parent=0
    #allocation4 [shape = 'u8[16384]{0}', space=vmem, size = 0x4000, scoped, tag = 'output window, operand 0']
    #allocation5 [shape = 's32[2]{0}', space=sflag, size = 0x8, scoped, tag = 'scoped memory for tpu_custom_call.1']
    %12 = vsyncpa [#allocation5], 0
    %s13 = scalar_lea.sflag [#allocation5], 1
    %14 = vsyncpa %s13, 0
    loop: start=0, step=1, limit=4
    $region2: #{tpu_custom_call.1} parent=1 // loop_pre_header
      _
    $region3: #{tpu_custom_call.1} parent=1 // loop_header
      %s16 = sphi 0, %s20
      %p17 = scmp.ge.s32.totalorder %s16, 4
      %s23 = sphi 0, %s35
      %s24 = sphi 0, %s31
      %s25 = sphi 0, %s23
      %s26 = sphi 0, %s24
      %s27 = sphi 0, %s25
      %s28 = sphi 0, %s26
      %s40 = sphi 0, %s42
      %s43 = sphi 0, %s40
      %s44 = sphi 0, %s43
      %s60 = sphi 0, %s44
      %s66 = sphi 0, %s68
      %s69 = sphi 0, %s66
      %s70 = sphi 0, %s69
      %s86 = sphi 0, %s70
      %s90 = sphi 0, %s90
      %s92 = sphi 0, %s90
      %s93 = sphi 0, %s92
      %s107 = sphi 0, %s93
      %s111 = sphi 0, %s111
      %s113 = sphi 0, %s111
      %s114 = sphi 0, %s113
      %s128 = sphi 0, %s114
      %s132 = sphi 0, %s132
      %s134 = sphi 0, %s132
      %s135 = sphi 0, %s134
      %s149 = sphi 0, %s135
      %s153 = sphi 0, %s153
      %s155 = sphi 0, %s153
      %s156 = sphi 0, %s155
      %s170 = sphi 0, %s156
      %s174 = sphi 0, %s174
      %s176 = sphi 0, %s174
      %s177 = sphi 0, %s176
      %s191 = sphi 0, %s177
      %s199 = sphi 0, %s201
      %s202 = sphi 0, %s199
      %s203 = sphi 0, %s202
      %s219 = sphi 0, %s203
    $region4: #{tpu_custom_call.1} parent=1 // loop_header_branch
      %19 = sbr.rel (%p17) target = $region8
    $region5: #{tpu_custom_call.1} parent=1 // loop_body
      %s21 = ssub.s32 %s16, 1
      %s22 = ssub.s32 %s16, 2
      %s29 = sadd.s32 1, %s24
      %p30 = scmp.ge.s32.totalorder %s29, 1
      %s31 = scalar_select %p30, 0, %s29
      %s32 = sadd.s32 1, %s23
      %s33 = scalar_select %p30, %s32, %s23
      %p34 = scmp.ge.s32.totalorder %s33, 2
      %s35 = scalar_select %p34, 0, %s33
      %s36 = ssub.s32 %s23, %s35
      %s37 = ssub.s32 %s24, %s31
      %s38 = sor.u32 %s36, %s37
      %p39 = scmp.eq.s32.totalorder %s38, 0
      %s41 = sadd.s32 %s40, 1
      %s42 = scalar_select %p39, %s40, %s41
      %p45 = pneg %p39
      %p46 = scmp.eq.s32.totalorder %s16, 1
      %p47 = por %p45, %p46
      %p48 = scmp.ne.s32.totalorder %s40, %s43
      %p49 = scmp.eq.s32.totalorder %s16, 0
      %p50 = por %p48, %p49
      %p51 = scmp.ne.s32.totalorder %s40, %s43
      %p52 = scmp.eq.s32.totalorder %s21, 1
      %p53 = por %p51, %p52
      %p54 = scmp.ne.s32.totalorder %s43, %s44
      %p55 = scmp.eq.s32.totalorder %s21, 0
      %p56 = por %p54, %p55
      %p57 = scmp.ne.s32.totalorder %s43, %s44
      %p58 = scmp.eq.s32.totalorder %s22, 1
      %p59 = por %p57, %p58
      %p61 = scmp.ne.s32.totalorder %s44, %s60
      %p62 = scmp.eq.s32.totalorder %s22, 0
      %p63 = por %p61, %p62
      %s64 = ssub.s32 %s23, %s35
      %p65 = scmp.eq.s32.totalorder %s64, 0
      %s67 = sadd.s32 %s66, 1
      %s68 = scalar_select %p65, %s66, %s67
      %p71 = pneg %p65
      %p72 = scmp.eq.s32.totalorder %s16, 1
      %p73 = por %p71, %p72
      %p74 = scmp.ne.s32.totalorder %s66, %s69
      %p75 = scmp.eq.s32.totalorder %s16, 0
      %p76 = por %p74, %p75
      %p77 = scmp.ne.s32.totalorder %s66, %s69
      %p78 = scmp.eq.s32.totalorder %s21, 1
      %p79 = por %p77, %p78
      %p80 = scmp.ne.s32.totalorder %s69, %s70
      %p81 = scmp.eq.s32.totalorder %s21, 0
      %p82 = por %p80, %p81
      %p83 = scmp.ne.s32.totalorder %s69, %s70
      %p84 = scmp.eq.s32.totalorder %s22, 1
      %p85 = por %p83, %p84
      %p87 = scmp.ne.s32.totalorder %s70, %s86
      %p88 = scmp.eq.s32.totalorder %s22, 0
      %p89 = por %p87, %p88
      %s91 = sadd.s32 %s90, 1
      %p94 = scmp.eq.s32.totalorder %s16, 1
      %p95 = scmp.ne.s32.totalorder %s90, %s92
      %p96 = scmp.eq.s32.totalorder %s16, 0
      %p97 = por %p95, %p96
      %p98 = scmp.ne.s32.totalorder %s90, %s92
      %p99 = scmp.eq.s32.totalorder %s21, 1
      %p100 = por %p98, %p99
      %p101 = scmp.ne.s32.totalorder %s92, %s93
      %p102 = scmp.eq.s32.totalorder %s21, 0
      %p103 = por %p101, %p102
      %p104 = scmp.ne.s32.totalorder %s92, %s93
      %p105 = scmp.eq.s32.totalorder %s22, 1
      %p106 = por %p104, %p105
      %p108 = scmp.ne.s32.totalorder %s93, %s107
      %p109 = scmp.eq.s32.totalorder %s22, 0
      %p110 = por %p108, %p109
      %s112 = sadd.s32 %s111, 1
      %p115 = scmp.eq.s32.totalorder %s16, 1
      %p116 = scmp.ne.s32.totalorder %s111, %s113
      %p117 = scmp.eq.s32.totalorder %s16, 0
      %p118 = por %p116, %p117
      %p119 = scmp.ne.s32.totalorder %s111, %s113
      %p120 = scmp.eq.s32.totalorder %s21, 1
      %p121 = por %p119, %p120
      %p122 = scmp.ne.s32.totalorder %s113, %s114
      %p123 = scmp.eq.s32.totalorder %s21, 0
      %p124 = por %p122, %p123
      %p125 = scmp.ne.s32.totalorder %s113, %s114
      %p126 = scmp.eq.s32.totalorder %s22, 1
      %p127 = por %p125, %p126
      %p129 = scmp.ne.s32.totalorder %s114, %s128
      %p130 = scmp.eq.s32.totalorder %s22, 0
      %p131 = por %p129, %p130
      %s133 = sadd.s32 %s132, 1
      %p136 = scmp.eq.s32.totalorder %s16, 1
      %p137 = scmp.ne.s32.totalorder %s132, %s134
      %p138 = scmp.eq.s32.totalorder %s16, 0
      %p139 = por %p137, %p138
      %p140 = scmp.ne.s32.totalorder %s132, %s134
      %p141 = scmp.eq.s32.totalorder %s21, 1
      %p142 = por %p140, %p141
      %p143 = scmp.ne.s32.totalorder %s134, %s135
      %p144 = scmp.eq.s32.totalorder %s21, 0
      %p145 = por %p143, %p144
      %p146 = scmp.ne.s32.totalorder %s134, %s135
      %p147 = scmp.eq.s32.totalorder %s22, 1
      %p148 = por %p146, %p147
      %p150 = scmp.ne.s32.totalorder %s135, %s149
      %p151 = scmp.eq.s32.totalorder %s22, 0
      %p152 = por %p150, %p151
      %s154 = sadd.s32 %s153, 1
      %p157 = scmp.eq.s32.totalorder %s16, 1
      %p158 = scmp.ne.s32.totalorder %s153, %s155
      %p159 = scmp.eq.s32.totalorder %s16, 0
      %p160 = por %p158, %p159
      %p161 = scmp.ne.s32.totalorder %s153, %s155
      %p162 = scmp.eq.s32.totalorder %s21, 1
      %p163 = por %p161, %p162
      %p164 = scmp.ne.s32.totalorder %s155, %s156
      %p165 = scmp.eq.s32.totalorder %s21, 0
      %p166 = por %p164, %p165
      %p167 = scmp.ne.s32.totalorder %s155, %s156
      %p168 = scmp.eq.s32.totalorder %s22, 1
      %p169 = por %p167, %p168
      %p171 = scmp.ne.s32.totalorder %s156, %s170
      %p172 = scmp.eq.s32.totalorder %s22, 0
      %p173 = por %p171, %p172
      %s175 = sadd.s32 %s174, 1
      %p178 = scmp.eq.s32.totalorder %s16, 1
      %p179 = scmp.ne.s32.totalorder %s174, %s176
      %p180 = scmp.eq.s32.totalorder %s16, 0
      %p181 = por %p179, %p180
      %p182 = scmp.ne.s32.totalorder %s174, %s176
      %p183 = scmp.eq.s32.totalorder %s21, 1
      %p184 = por %p182, %p183
      %p185 = scmp.ne.s32.totalorder %s176, %s177
      %p186 = scmp.eq.s32.totalorder %s21, 0
      %p187 = por %p185, %p186
      %p188 = scmp.ne.s32.totalorder %s176, %s177
      %p189 = scmp.eq.s32.totalorder %s22, 1
      %p190 = por %p188, %p189
      %p192 = scmp.ne.s32.totalorder %s177, %s191
      %p193 = scmp.eq.s32.totalorder %s22, 0
      %p194 = por %p192, %p193
      %s195 = ssub.s32 %s23, %s35
      %s196 = ssub.s32 %s24, %s31
      %s197 = sor.u32 %s195, %s196
      %p198 = scmp.eq.s32.totalorder %s197, 0
      %s200 = sadd.s32 %s199, 1
      %s201 = scalar_select %p198, %s199, %s200
      %p204 = pneg %p198
      %p205 = scmp.eq.s32.totalorder %s16, 1
      %p206 = por %p204, %p205
      %p207 = scmp.ne.s32.totalorder %s199, %s202
      %p208 = scmp.eq.s32.totalorder %s16, 0
      %p209 = por %p207, %p208
      %p210 = scmp.ne.s32.totalorder %s199, %s202
      %p211 = scmp.eq.s32.totalorder %s21, 1
      %p212 = por %p210, %p211
      %p213 = scmp.ne.s32.totalorder %s202, %s203
      %p214 = scmp.eq.s32.totalorder %s21, 0
      %p215 = por %p213, %p214
      %p216 = scmp.ne.s32.totalorder %s202, %s203
      %p217 = scmp.eq.s32.totalorder %s22, 1
      %p218 = por %p216, %p217
      %p220 = scmp.ne.s32.totalorder %s203, %s219
      %p221 = scmp.eq.s32.totalorder %s22, 0
      %p222 = por %p220, %p221
      %p223 = scmp.le.s32.totalorder 1, %s16
      %p224 = scmp.lt.s32.totalorder %s16, 3
      %p225 = pnand %p223, %p224
      %p226 = pneg %p225
      // Predicated region
      $region9: #{tpu_custom_call.1} parent=5 // pred_check
        _
      $region10: #{tpu_custom_call.1} parent=5 // pred_check_branch
        %228 = sbr.rel (%p225) target = $region12
      $region11: #{tpu_custom_call.1} parent=5 // pred_region
        %s229 = ssub.s32 %s16, 1
        // Predicated region
        $region13: #{tpu_custom_call.1} parent=11 // pred_check
          %p230 = pneg %p103
        $region14: #{tpu_custom_call.1} parent=11 // pred_check_branch
          %232 = sbr.rel (%p230) target = $region16
        $region15: #{tpu_custom_call.1} parent=11 // pred_region
          _
        $region16: #{tpu_custom_call.1} parent=11 // pred_fallthru
          _
        // Predicated region
        $region17: #{tpu_custom_call.1} parent=11 // pred_check
          %p233 = pneg %p124
        $region18: #{tpu_custom_call.1} parent=11 // pred_check_branch
          %235 = sbr.rel (%p233) target = $region20
        $region19: #{tpu_custom_call.1} parent=11 // pred_region
          _
        $region20: #{tpu_custom_call.1} parent=11 // pred_fallthru
          _
        // Predicated region
        $region21: #{tpu_custom_call.1} parent=11 // pred_check
          %p236 = pneg %p145
        $region22: #{tpu_custom_call.1} parent=11 // pred_check_branch
          %238 = sbr.rel (%p236) target = $region24
        $region23: #{tpu_custom_call.1} parent=11 // pred_region
          _
        $region24: #{tpu_custom_call.1} parent=11 // pred_fallthru
          _
        // Predicated region
        $region25: #{tpu_custom_call.1} parent=11 // pred_check
          %p239 = pneg %p166
        $region26: #{tpu_custom_call.1} parent=11 // pred_check_branch
          %241 = sbr.rel (%p239) target = $region28
        $region27: #{tpu_custom_call.1} parent=11 // pred_region
          _
        $region28: #{tpu_custom_call.1} parent=11 // pred_fallthru
          _
        // Predicated region
        $region29: #{tpu_custom_call.1} parent=11 // pred_check
          %p242 = pneg %p187
        $region30: #{tpu_custom_call.1} parent=11 // pred_check_branch
          %244 = sbr.rel (%p242) target = $region32
        $region31: #{tpu_custom_call.1} parent=11 // pred_region
          _
        $region32: #{tpu_custom_call.1} parent=11 // pred_fallthru
          _
      $region12: #{tpu_custom_call.1} parent=5 // pred_fallthru
        _
      %p245 = scmp.lt.s32.totalorder %s16, 2
      // Predicated region
      $region33: #{tpu_custom_call.1} parent=5 // pred_check
        %p246 = pneg %p245
      $region34: #{tpu_custom_call.1} parent=5 // pred_check_branch
        %248 = sbr.rel (%p246) target = $region36
      $region35: #{tpu_custom_call.1} parent=5 // pred_region
        // Predicated region
        $region37: #{tpu_custom_call.1} parent=35 // pred_check
          %p249 = pneg %p50
        $region38: #{tpu_custom_call.1} parent=35 // pred_check_branch
          %251 = sbr.rel (%p249) target = $region40
        $region39: #{tpu_custom_call.1} parent=35 // pred_region
          %s252 = smul.u32 2, %s24
          %p253 = scmp.lt.s32.totalorder %s23, 1
          %s254 = scalar_select %p253, %s23, 1
          %p255 = scmp.lt.s32.totalorder %s252, 1
          %s256 = scalar_select %p255, %s252, 1
          %s257 = smul.addr %s254, 2
          %s258 = sadd.s32 %s256, %s257
          %s259 = smul.addr %s258, 8
          %s260 = scalar_lea.vmem %s0, %s259
          %s261 = smul.u32 2, %s24
        $region40: #{tpu_custom_call.1} parent=35 // pred_fallthru
          _
        // Predicated region
        $region41: #{tpu_custom_call.1} parent=35 // pred_check
          %p262 = pneg %p76
        $region42: #{tpu_custom_call.1} parent=35 // pred_check_branch
          %264 = sbr.rel (%p262) target = $region44
        $region43: #{tpu_custom_call.1} parent=35 // pred_region
          %p265 = scmp.lt.s32.totalorder %s23, 1
          %s266 = scalar_select %p265, %s23, 1
          %s267 = smul.addr %s266, 16
          %s268 = smul.addr %s267, 8
          %s269 = scalar_lea.vmem %s1, %s268
        $region44: #{tpu_custom_call.1} parent=35 // pred_fallthru
          _
      $region36: #{tpu_custom_call.1} parent=5 // pred_fallthru
        _
      %p270 = scmp.le.s32.totalorder 1, %s16
      %p271 = scmp.lt.s32.totalorder %s16, 3
      %p272 = pnand %p270, %p271
      %p273 = pneg %p272
      // Predicated region
      $region45: #{tpu_custom_call.1} parent=5 // pred_check
        _
      $region46: #{tpu_custom_call.1} parent=5 // pred_check_branch
        %275 = sbr.rel (%p272) target = $region48
      $region47: #{tpu_custom_call.1} parent=5 // pred_region
        %s276 = ssub.s32 %s16, 1
        %s277 = smul.u32 2, %s26
        %p278 = scmp.lt.s32.totalorder %s25, 1
        %s279 = scalar_select %p278, %s25, 1
        %p280 = scmp.lt.s32.totalorder %s277, 1
        %s281 = scalar_select %p280, %s277, 1
        %s282 = smul.addr %s279, 2
        %s283 = sadd.s32 %s281, %s282
        %s284 = smul.addr %s283, 8
        %s285 = scalar_lea.vmem %s0, %s284
        %p286 = pneg %p56
        %p287 = pneg %p53
        %p288 = scmp.lt.s32.totalorder %s25, 1
        %s289 = scalar_select %p288, %s25, 1
        %s290 = smul.addr %s289, 16
        %s291 = smul.addr %s290, 8
        %s292 = scalar_lea.vmem %s1, %s291
        %p293 = pneg %p82
        %p294 = pneg %p79
        %p295 = pneg %p103
        %p296 = pneg %p100
        %p297 = pneg %p124
        %p298 = pneg %p121
        %p299 = pneg %p145
        %p300 = pneg %p142
        %p301 = pneg %p166
        %p302 = pneg %p163
        %p303 = pneg %p187
        %p304 = pneg %p184
        %p305 = pneg %p215
        %p306 = pneg %p212
        %s307 = sand.u32 %s202, 1
        %s308 = scalar_lea.sflag [#allocation5], %s307
        %s309 = sand.u32 %s202, 1
        %s310 = smul.addr %s309, 16
        %s311 = scalar_lea.vmem [#allocation4], %s310
        %s312 = smul.u32 2, %s26
        %p313 = scmp.lt.s32.totalorder %s25, 1
        %s314 = scalar_select %p313, %s25, 1
        %p315 = scmp.lt.s32.totalorder %s312, 1
        %s316 = scalar_select %p315, %s312, 1
        %s317 = smul.addr %s314, 2
        %s318 = sadd.s32 %s316, %s317
        %s319 = smul.addr %s318, 8
        %s320 = scalar_lea.vmem %s0, %s319
        %s321 = smul.u32 2, %s26
        %p322 = scmp.lt.s32.totalorder %s25, 1
        %s323 = scalar_select %p322, %s25, 1
        %s324 = smul.addr %s323, 16
        %s325 = smul.addr %s324, 8
        %s326 = scalar_lea.vmem %s1, %s325
        %s327 = smul.u32 2, %s26
        %p328 = scmp.eq.s32.totalorder %s26, 0
        // Predicated region
        $region49: #{tpu_custom_call.1} parent=47 // pred_check
          %p329 = pneg %p328
        $region50: #{tpu_custom_call.1} parent=47 // pred_check_branch
          %331 = sbr.rel (%p329) target = $region52
        $region51: #{tpu_custom_call.1} parent=47 // pred_region
          %v332 = vld [vmem:[%s326] sm:$0xff]
          %v333 = vld [vmem:[%s326 + $0x8] sm:$0xff]
          %v334 = vld [vmem:[%s326 + $0x10] sm:$0xff]
          %v335 = vld [vmem:[%s326 + $0x18] sm:$0xff]
          %v336 = vld [vmem:[%s326 + $0x20] sm:$0xff]
          %v337 = vld [vmem:[%s326 + $0x28] sm:$0xff]
          %v338 = vld [vmem:[%s326 + $0x30] sm:$0xff]
          %v339 = vld [vmem:[%s326 + $0x38] sm:$0xff]
          %v340 = vld [vmem:[%s326 + $0x40] sm:$0xff]
          %v341 = vld [vmem:[%s326 + $0x48] sm:$0xff]
          %v342 = vld [vmem:[%s326 + $0x50] sm:$0xff]
          %v343 = vld [vmem:[%s326 + $0x58] sm:$0xff]
          %v344 = vld [vmem:[%s326 + $0x60] sm:$0xff]
          %v345 = vld [vmem:[%s326 + $0x68] sm:$0xff]
          %v346 = vld [vmem:[%s326 + $0x70] sm:$0xff]
          %v347 = vld [vmem:[%s326 + $0x78] sm:$0xff]
          %v348 = vld [vmem:[%s3] sm:$0xff]
          %v349 = vld [vmem:[%s3 + $0x8] sm:$0xff]
          %v350 = vld [vmem:[%s3 + $0x10] sm:$0xff]
          %v351 = vld [vmem:[%s3 + $0x18] sm:$0xff]
          %vm352 = vcmask 261120
          %v354 = vsel %vm352, %v332, 0
          %v357 = vsel %vm352, %v333, 0
          %v360 = vsel %vm352, %v334, 0
          %v363 = vsel %vm352, %v335, 0
          %v366 = vsel %vm352, %v336, 0
          %v369 = vsel %vm352, %v337, 0
          %v372 = vsel %vm352, %v338, 0
          %v375 = vsel %vm352, %v339, 0
          %v378 = vsel %vm352, %v340, 0
          %v381 = vsel %vm352, %v341, 0
          %v384 = vsel %vm352, %v342, 0
          %v387 = vsel %vm352, %v343, 0
          %v390 = vsel %vm352, %v344, 0
          %v393 = vsel %vm352, %v345, 0
          %v396 = vsel %vm352, %v346, 0
          %v399 = vsel %vm352, %v347, 0
          %401 = vmatprep.subr.mxu0 0.0
          %402 = vmatpush1.msra.mxu0 %v348
          %403 = vmatprep.subr.mxu0 0.0
          %404 = vmatpush1.msra.mxu0 %v349
          %405 = vmatprep.subr.mxu0 0.0
          %406 = vmatpush1.msra.mxu0 %v350
          %407 = vmatprep.subr.mxu0 0.0
          %408 = vmatpush1.msra.mxu0 %v351
          %409 = vmatprep.subr.mxu0 0.0
          %410 = vmatpush1.msra.mxu0 0.0
          %411 = vmatprep.subr.mxu0 0.0
          %412 = vmatpush1.msra.mxu0 0.0
          %413 = vmatprep.subr.mxu0 0.0
          %414 = vmatpush1.msra.mxu0 0.0
          %415 = vmatprep.subr.mxu0 0.0
          %416 = vmatpush1.msra.mxu0 0.0
          %417 = vmatprep.subr.mxu0 0.0
          %418 = vmatpush1.msra.mxu0 0.0
          %419 = vmatprep.subr.mxu0 0.0
          %420 = vmatpush1.msra.mxu0 0.0
          %421 = vmatprep.subr.mxu0 0.0
          %422 = vmatpush1.msra.mxu0 0.0
          %423 = vmatprep.subr.mxu0 0.0
          %424 = vmatpush1.msra.mxu0 0.0
          %425 = vmatprep.subr.mxu0 0.0
          %426 = vmatpush1.msra.mxu0 0.0
          %427 = vmatprep.subr.mxu0 0.0
          %428 = vmatpush1.msra.mxu0 0.0
          %429 = vmatprep.subr.mxu0 0.0
          %430 = vmatpush1.msra.mxu0 0.0
          %431 = vmatprep.subr.mxu0 0.0
          %432 = vmatpush1.msra.mxu0 0.0
          %433 = vmatprep.subr.mxu0 0.0
          %434 = vmatpush1.msra.mxu0 0.0
          %435 = vmatprep.subr.mxu0 0.0
          %436 = vmatpush1.msra.mxu0 0.0
          %437 = vmatprep.subr.mxu0 0.0
          %438 = vmatpush1.msra.mxu0 0.0
          %439 = vmatprep.subr.mxu0 0.0
          %440 = vmatpush1.msra.mxu0 0.0
          %441 = vmatprep.subr.mxu0 0.0
          %442 = vmatpush1.msra.mxu0 0.0
          %443 = vmatprep.subr.mxu0 0.0
          %444 = vmatpush1.msra.mxu0 0.0
          %445 = vmatprep.subr.mxu0 0.0
          %446 = vmatpush1.msra.mxu0 0.0
          %447 = vmatprep.subr.mxu0 0.0
          %448 = vmatpush1.msra.mxu0 0.0
          %449 = vmatprep.subr.mxu0 0.0
          %450 = vmatpush1.msra.mxu0 0.0
          %451 = vmatprep.subr.mxu0 0.0
          %452 = vmatpush1.msra.mxu0 0.0
          %453 = vmatprep.subr.mxu0 0.0
          %454 = vmatpush1.msra.mxu0 0.0
          %455 = vmatprep.subr.mxu0 0.0
          %456 = vmatpush1.msra.mxu0 0.0
          %457 = vmatprep.subr.mxu0 0.0
          %458 = vmatpush1.msra.mxu0 0.0
          %459 = vmatprep.subr.mxu0 0.0
          %460 = vmatpush1.msra.mxu0 0.0
          %461 = vmatprep.subr.mxu0 0.0
          %462 = vmatpush1.msra.mxu0 0.0
          %463 = vmatprep.subr.mxu0 0.0
          %464 = vmatpush1.msra.mxu0 0.0
          %465 = vmatprep.mubr.f32.mxu0 0.0
          %466 = vmatmul.mubr.f32.gmra.mrb[0].mxu0 %v354
          %v467 = vpop.f32.mrb[0].mxu0
          %v468 = vadd.f32 0.0, %v467
          %v469 = vpop.f32.mrb[0].mxu0
          %470 = vmatprep.mubr.f32.mxu0 0.0
          %471 = vmatmul.mubr.f32.gmra.mrb[0].mxu0 %v357
          %v472 = vpop.f32.mrb[0].mxu0
          %v473 = vadd.f32 0.0, %v472
          %v474 = vpop.f32.mrb[0].mxu0
          %475 = vmatprep.mubr.f32.mxu0 0.0
          %476 = vmatmul.mubr.f32.gmra.mrb[0].mxu0 %v360
          %v477 = vpop.f32.mrb[0].mxu0
          %v478 = vadd.f32 0.0, %v477
          %v479 = vpop.f32.mrb[0].mxu0
          %480 = vmatprep.mubr.f32.mxu0 0.0
          %481 = vmatmul.mubr.f32.gmra.mrb[0].mxu0 %v363
          %v482 = vpop.f32.mrb[0].mxu0
          %v483 = vadd.f32 0.0, %v482
          %v484 = vpop.f32.mrb[0].mxu0
          %485 = vmatprep.mubr.f32.mxu0 0.0
          %486 = vmatmul.mubr.f32.gmra.mrb[0].mxu0 %v366
          %v487 = vpop.f32.mrb[0].mxu0
          %v488 = vadd.f32 0.0, %v487
          %v489 = vpop.f32.mrb[0].mxu0
          %490 = vmatprep.mubr.f32.mxu0 0.0
          %491 = vmatmul.mubr.f32.gmra.mrb[0].mxu0 %v369
          %v492 = vpop.f32.mrb[0].mxu0
          %v493 = vadd.f32 0.0, %v492
          %v494 = vpop.f32.mrb[0].mxu0
          %495 = vmatprep.mubr.f32.mxu0 0.0
          %496 = vmatmul.mubr.f32.gmra.mrb[0].mxu0 %v372
          %v497 = vpop.f32.mrb[0].mxu0
          %v498 = vadd.f32 0.0, %v497
          %v499 = vpop.f32.mrb[0].mxu0
          %500 = vmatprep.mubr.f32.mxu0 0.0
          %501 = vmatmul.mubr.f32.gmra.mrb[0].mxu0 %v375
          %v502 = vpop.f32.mrb[0].mxu0
          %v503 = vadd.f32 0.0, %v502
          %v504 = vpop.f32.mrb[0].mxu0
          %505 = vmatprep.mubr.f32.mxu0 0.0
          %506 = vmatmul.mubr.f32.gmra.mrb[0].mxu0 %v378
          %v507 = vpop.f32.mrb[0].mxu0
          %v508 = vadd.f32 0.0, %v507
          %v509 = vpop.f32.mrb[0].mxu0
          %510 = vmatprep.mubr.f32.mxu0 0.0
          %511 = vmatmul.mubr.f32.gmra.mrb[0].mxu0 %v381
          %v512 = vpop.f32.mrb[0].mxu0
          %v513 = vadd.f32 0.0, %v512
          %v514 = vpop.f32.mrb[0].mxu0
          %515 = vmatprep.mubr.f32.mxu0 0.0
          %516 = vmatmul.mubr.f32.gmra.mrb[0].mxu0 %v384
          %v517 = vpop.f32.mrb[0].mxu0
          %v518 = vadd.f32 0.0, %v517
          %v519 = vpop.f32.mrb[0].mxu0
          %520 = vmatprep.mubr.f32.mxu0 0.0
          %521 = vmatmul.mubr.f32.gmra.mrb[0].mxu0 %v387
          %v522 = vpop.f32.mrb[0].mxu0
          %v523 = vadd.f32 0.0, %v522
          %v524 = vpop.f32.mrb[0].mxu0
          %525 = vmatprep.mubr.f32.mxu0 0.0
          %526 = vmatmul.mubr.f32.gmra.mrb[0].mxu0 %v390
          %v527 = vpop.f32.mrb[0].mxu0
          %v528 = vadd.f32 0.0, %v527
          %v529 = vpop.f32.mrb[0].mxu0
          %530 = vmatprep.mubr.f32.mxu0 0.0
          %531 = vmatmul.mubr.f32.gmra.mrb[0].mxu0 %v393
          %v532 = vpop.f32.mrb[0].mxu0
          %v533 = vadd.f32 0.0, %v532
          %v534 = vpop.f32.mrb[0].mxu0
          %535 = vmatprep.mubr.f32.mxu0 0.0
          %536 = vmatmul.mubr.f32.gmra.mrb[0].mxu0 %v396
          %v537 = vpop.f32.mrb[0].mxu0
          %v538 = vadd.f32 0.0, %v537
          %v539 = vpop.f32.mrb[0].mxu0
          %540 = vmatprep.mubr.f32.mxu0 0.0
          %541 = vmatmul.mubr.f32.gmra.mrb[0].mxu0 %v399
          %v542 = vpop.f32.mrb[0].mxu0
          %v543 = vadd.f32 0.0, %v542
          %v544 = vpop.f32.mrb[0].mxu0
          %545 = vdwg.mxu0
          %546 = vst.msk [vmem:[#allocation2] sm:$0xff] %vm352, %v468
          %547 = vst.msk [vmem:[#allocation2 + $0x8] sm:$0xff] %vm352, %v473
          %548 = vst.msk [vmem:[#allocation2 + $0x10] sm:$0xff] %vm352, %v478
          %549 = vst.msk [vmem:[#allocation2 + $0x18] sm:$0xff] %vm352, %v483
          %550 = vst.msk [vmem:[#allocation2 + $0x20] sm:$0xff] %vm352, %v488
          %551 = vst.msk [vmem:[#allocation2 + $0x28] sm:$0xff] %vm352, %v493
          %552 = vst.msk [vmem:[#allocation2 + $0x30] sm:$0xff] %vm352, %v498
          %553 = vst.msk [vmem:[#allocation2 + $0x38] sm:$0xff] %vm352, %v503
          %554 = vst.msk [vmem:[#allocation2 + $0x40] sm:$0xff] %vm352, %v508
          %555 = vst.msk [vmem:[#allocation2 + $0x48] sm:$0xff] %vm352, %v513
          %556 = vst.msk [vmem:[#allocation2 + $0x50] sm:$0xff] %vm352, %v518
          %557 = vst.msk [vmem:[#allocation2 + $0x58] sm:$0xff] %vm352, %v523
          %558 = vst.msk [vmem:[#allocation2 + $0x60] sm:$0xff] %vm352, %v528
          %559 = vst.msk [vmem:[#allocation2 + $0x68] sm:$0xff] %vm352, %v533
          %560 = vst.msk [vmem:[#allocation2 + $0x70] sm:$0xff] %vm352, %v538
          %561 = vst.msk [vmem:[#allocation2 + $0x78] sm:$0xff] %vm352, %v543
          %v562 = vld [vmem:[%s4] sm:$0xff]
          %v563 = vld [vmem:[%s4 + $0x8] sm:$0xff]
          %v564 = vld [vmem:[%s4 + $0x10] sm:$0xff]
          %v565 = vld [vmem:[%s4 + $0x18] sm:$0xff]
          %566 = vmatprep.subr.mxu0 0.0
          %567 = vmatpush1.msra.mxu0 %v562
          %568 = vmatprep.subr.mxu0 0.0
          %569 = vmatpush1.msra.mxu0 %v563
          %570 = vmatprep.subr.mxu0 0.0
          %571 = vmatpush1.msra.mxu0 %v564
          %572 = vmatprep.subr.mxu0 0.0
          %573 = vmatpush1.msra.mxu0 %v565
          %574 = vmatprep.subr.mxu0 0.0
          %575 = vmatpush1.msra.mxu0 0.0
          %576 = vmatprep.subr.mxu0 0.0
          %577 = vmatpush1.msra.mxu0 0.0
          %578 = vmatprep.subr.mxu0 0.0
          %579 = vmatpush1.msra.mxu0 0.0
          %580 = vmatprep.subr.mxu0 0.0
          %581 = vmatpush1.msra.mxu0 0.0
          %582 = vmatprep.subr.mxu0 0.0
          %583 = vmatpush1.msra.mxu0 0.0
          %584 = vmatprep.subr.mxu0 0.0
          %585 = vmatpush1.msra.mxu0 0.0
          %586 = vmatprep.subr.mxu0 0.0
          %587 = vmatpush1.msra.mxu0 0.0
          %588 = vmatprep.subr.mxu0 0.0
          %589 = vmatpush1.msra.mxu0 0.0
          %590 = vmatprep.subr.mxu0 0.0
          %591 = vmatpush1.msra.mxu0 0.0
          %592 = vmatprep.subr.mxu0 0.0
          %593 = vmatpush1.msra.mxu0 0.0
          %594 = vmatprep.subr.mxu0 0.0
          %595 = vmatpush1.msra.mxu0 0.0
          %596 = vmatprep.subr.mxu0 0.0
          %597 = vmatpush1.msra.mxu0 0.0
          %598 = vmatprep.subr.mxu0 0.0
          %599 = vmatpush1.msra.mxu0 0.0
          %600 = vmatprep.subr.mxu0 0.0
          %601 = vmatpush1.msra.mxu0 0.0
          %602 = vmatprep.subr.mxu0 0.0
          %603 = vmatpush1.msra.mxu0 0.0
          %604 = vmatprep.subr.mxu0 0.0
          %605 = vmatpush1.msra.mxu0 0.0
          %606 = vmatprep.subr.mxu0 0.0
          %607 = vmatpush1.msra.mxu0 0.0
          %608 = vmatprep.subr.mxu0 0.0
          %609 = vmatpush1.msra.mxu0 0.0
          %610 = vmatprep.subr.mxu0 0.0
          %611 = vmatpush1.msra.mxu0 0.0
          %612 = vmatprep.subr.mxu0 0.0
          %613 = vmatpush1.msra.mxu0 0.0
          %614 = vmatprep.subr.mxu0 0.0
          %615 = vmatpush1.msra.mxu0 0.0
          %616 = vmatprep.subr.mxu0 0.0
          %617 = vmatpush1.msra.mxu0 0.0
          %618 = vmatprep.subr.mxu0 0.0
          %619 = vmatpush1.msra.mxu0 0.0
          %620 = vmatprep.subr.mxu0 0.0
          %621 = vmatpush1.msra.mxu0 0.0
          %622 = vmatprep.subr.mxu0 0.0
          %623 = vmatpush1.msra.mxu0 0.0
          %624 = vmatprep.subr.mxu0 0.0
          %625 = vmatpush1.msra.mxu0 0.0
          %626 = vmatprep.subr.mxu0 0.0
          %627 = vmatpush1.msra.mxu0 0.0
          %628 = vmatprep.subr.mxu0 0.0
          %629 = vmatpush1.msra.mxu0 0.0
          %630 = vmatprep.mubr.f32.mxu0 0.0
          %631 = vmatmul.mubr.f32.gmra.mrb[0].mxu0 %v354
          %v632 = vpop.f32.mrb[0].mxu0
          %v633 = vadd.f32 0.0, %v632
          %v634 = vpop.f32.mrb[0].mxu0
          %635 = vmatprep.mubr.f32.mxu0 0.0
          %636 = vmatmul.mubr.f32.gmra.mrb[0].mxu0 %v357
          %v637 = vpop.f32.mrb[0].mxu0
          %v638 = vadd.f32 0.0, %v637
          %v639 = vpop.f32.mrb[0].mxu0
          %640 = vmatprep.mubr.f32.mxu0 0.0
          %641 = vmatmul.mubr.f32.gmra.mrb[0].mxu0 %v360
          %v642 = vpop.f32.mrb[0].mxu0
          %v643 = vadd.f32 0.0, %v642
          %v644 = vpop.f32.mrb[0].mxu0
          %645 = vmatprep.mubr.f32.mxu0 0.0
          %646 = vmatmul.mubr.f32.gmra.mrb[0].mxu0 %v363
          %v647 = vpop.f32.mrb[0].mxu0
          %v648 = vadd.f32 0.0, %v647
          %v649 = vpop.f32.mrb[0].mxu0
          %650 = vmatprep.mubr.f32.mxu0 0.0
          %651 = vmatmul.mubr.f32.gmra.mrb[0].mxu0 %v366
          %v652 = vpop.f32.mrb[0].mxu0
          %v653 = vadd.f32 0.0, %v652
          %v654 = vpop.f32.mrb[0].mxu0
          %655 = vmatprep.mubr.f32.mxu0 0.0
          %656 = vmatmul.mubr.f32.gmra.mrb[0].mxu0 %v369
          %v657 = vpop.f32.mrb[0].mxu0
          %v658 = vadd.f32 0.0, %v657
          %v659 = vpop.f32.mrb[0].mxu0
          %660 = vmatprep.mubr.f32.mxu0 0.0
          %661 = vmatmul.mubr.f32.gmra.mrb[0].mxu0 %v372
          %v662 = vpop.f32.mrb[0].mxu0
          %v663 = vadd.f32 0.0, %v662
          %v664 = vpop.f32.mrb[0].mxu0
          %665 = vmatprep.mubr.f32.mxu0 0.0
          %666 = vmatmul.mubr.f32.gmra.mrb[0].mxu0 %v375
          %v667 = vpop.f32.mrb[0].mxu0
          %v668 = vadd.f32 0.0, %v667
          %v669 = vpop.f32.mrb[0].mxu0
          %670 = vmatprep.mubr.f32.mxu0 0.0
          %671 = vmatmul.mubr.f32.gmra.mrb[0].mxu0 %v378
          %v672 = vpop.f32.mrb[0].mxu0
          %v673 = vadd.f32 0.0, %v672
          %v674 = vpop.f32.mrb[0].mxu0
          %675 = vmatprep.mubr.f32.mxu0 0.0
          %676 = vmatmul.mubr.f32.gmra.mrb[0].mxu0 %v381
          %v677 = vpop.f32.mrb[0].mxu0
          %v678 = vadd.f32 0.0, %v677
          %v679 = vpop.f32.mrb[0].mxu0
          %680 = vmatprep.mubr.f32.mxu0 0.0
          %681 = vmatmul.mubr.f32.gmra.mrb[0].mxu0 %v384
          %v682 = vpop.f32.mrb[0].mxu0
          %v683 = vadd.f32 0.0, %v682
          %v684 = vpop.f32.mrb[0].mxu0
          %685 = vmatprep.mubr.f32.mxu0 0.0
          %686 = vmatmul.mubr.f32.gmra.mrb[0].mxu0 %v387
          %v687 = vpop.f32.mrb[0].mxu0
          %v688 = vadd.f32 0.0, %v687
          %v689 = vpop.f32.mrb[0].mxu0
          %690 = vmatprep.mubr.f32.mxu0 0.0
          %691 = vmatmul.mubr.f32.gmra.mrb[0].mxu0 %v390
          %v692 = vpop.f32.mrb[0].mxu0
          %v693 = vadd.f32 0.0, %v692
          %v694 = vpop.f32.mrb[0].mxu0
          %695 = vmatprep.mubr.f32.mxu0 0.0
          %696 = vmatmul.mubr.f32.gmra.mrb[0].mxu0 %v393
          %v697 = vpop.f32.mrb[0].mxu0
          %v698 = vadd.f32 0.0, %v697
          %v699 = vpop.f32.mrb[0].mxu0
          %700 = vmatprep.mubr.f32.mxu0 0.0
          %701 = vmatmul.mubr.f32.gmra.mrb[0].mxu0 %v396
          %v702 = vpop.f32.mrb[0].mxu0
          %v703 = vadd.f32 0.0, %v702
          %v704 = vpop.f32.mrb[0].mxu0
          %705 = vmatprep.mubr.f32.mxu0 0.0
          %706 = vmatmul.mubr.f32.gmra.mrb[0].mxu0 %v399
          %v707 = vpop.f32.mrb[0].mxu0
          %v708 = vadd.f32 0.0, %v707
          %v709 = vpop.f32.mrb[0].mxu0
          %710 = vdwg.mxu0
          %711 = vst.msk [vmem:[#allocation3] sm:$0xff] %vm352, %v633
          %712 = vst.msk [vmem:[#allocation3 + $0x8] sm:$0xff] %vm352, %v638
          %713 = vst.msk [vmem:[#allocation3 + $0x10] sm:$0xff] %vm352, %v643
          %714 = vst.msk [vmem:[#allocation3 + $0x18] sm:$0xff] %vm352, %v648
          %715 = vst.msk [vmem:[#allocation3 + $0x20] sm:$0xff] %vm352, %v653
          %716 = vst.msk [vmem:[#allocation3 + $0x28] sm:$0xff] %vm352, %v658
          %717 = vst.msk [vmem:[#allocation3 + $0x30] sm:$0xff] %vm352, %v663
          %718 = vst.msk [vmem:[#allocation3 + $0x38] sm:$0xff] %vm352, %v668
          %719 = vst.msk [vmem:[#allocation3 + $0x40] sm:$0xff] %vm352, %v673
          %720 = vst.msk [vmem:[#allocation3 + $0x48] sm:$0xff] %vm352, %v678
          %721 = vst.msk [vmem:[#allocation3 + $0x50] sm:$0xff] %vm352, %v683
          %722 = vst.msk [vmem:[#allocation3 + $0x58] sm:$0xff] %vm352, %v688
          %723 = vst.msk [vmem:[#allocation3 + $0x60] sm:$0xff] %vm352, %v693
          %724 = vst.msk [vmem:[#allocation3 + $0x68] sm:$0xff] %vm352, %v698
          %725 = vst.msk [vmem:[#allocation3 + $0x70] sm:$0xff] %vm352, %v703
          %726 = vst.msk [vmem:[#allocation3 + $0x78] sm:$0xff] %vm352, %v708
        $region52: #{tpu_custom_call.1} parent=47 // pred_fallthru
          _
        %v727 = vld [vmem:[%s320] sm:$0xff]
        %v728 = vld [vmem:[%s320 + $0x8] sm:$0xff]
        %v729 = vld [vmem:[%s2] sm:$0xff]
        %v730 = vld [vmem:[%s2 + $0x8] sm:$0xff]
        %v731 = vld [vmem:[%s2 + $0x10] sm:$0xff]
        %v732 = vld [vmem:[%s2 + $0x18] sm:$0xff]
        %vm733 = vcmask 261120
        %v735 = vsel %vm733, %v727, 0
        %v738 = vsel %vm733, %v728, 0
        %740 = vmatprep.subr.mxu0 0.0
        %741 = vmatpush1.msra.mxu0 %v729
        %742 = vmatprep.subr.mxu0 0.0
        %743 = vmatpush1.msra.mxu0 %v730
        %744 = vmatprep.subr.mxu0 0.0
        %745 = vmatpush1.msra.mxu0 %v731
        %746 = vmatprep.subr.mxu0 0.0
        %747 = vmatpush1.msra.mxu0 %v732
        %748 = vmatprep.subr.mxu0 0.0
        %749 = vmatpush1.msra.mxu0 0.0
        %750 = vmatprep.subr.mxu0 0.0
        %751 = vmatpush1.msra.mxu0 0.0
        %752 = vmatprep.subr.mxu0 0.0
        %753 = vmatpush1.msra.mxu0 0.0
        %754 = vmatprep.subr.mxu0 0.0
        %755 = vmatpush1.msra.mxu0 0.0
        %756 = vmatprep.subr.mxu0 0.0
        %757 = vmatpush1.msra.mxu0 0.0
        %758 = vmatprep.subr.mxu0 0.0
        %759 = vmatpush1.msra.mxu0 0.0
        %760 = vmatprep.subr.mxu0 0.0
        %761 = vmatpush1.msra.mxu0 0.0
        %762 = vmatprep.subr.mxu0 0.0
        %763 = vmatpush1.msra.mxu0 0.0
        %764 = vmatprep.subr.mxu0 0.0
        %765 = vmatpush1.msra.mxu0 0.0
        %766 = vmatprep.subr.mxu0 0.0
        %767 = vmatpush1.msra.mxu0 0.0
        %768 = vmatprep.subr.mxu0 0.0
        %769 = vmatpush1.msra.mxu0 0.0
        %770 = vmatprep.subr.mxu0 0.0
        %771 = vmatpush1.msra.mxu0 0.0
        %772 = vmatprep.subr.mxu0 0.0
        %773 = vmatpush1.msra.mxu0 0.0
        %774 = vmatprep.subr.mxu0 0.0
        %775 = vmatpush1.msra.mxu0 0.0
        %776 = vmatprep.subr.mxu0 0.0
        %777 = vmatpush1.msra.mxu0 0.0
        %778 = vmatprep.subr.mxu0 0.0
        %779 = vmatpush1.msra.mxu0 0.0
        %780 = vmatprep.subr.mxu0 0.0
        %781 = vmatpush1.msra.mxu0 0.0
        %782 = vmatprep.subr.mxu0 0.0
        %783 = vmatpush1.msra.mxu0 0.0
        %784 = vmatprep.subr.mxu0 0.0
        %785 = vmatpush1.msra.mxu0 0.0
        %786 = vmatprep.subr.mxu0 0.0
        %787 = vmatpush1.msra.mxu0 0.0
        %788 = vmatprep.subr.mxu0 0.0
        %789 = vmatpush1.msra.mxu0 0.0
        %790 = vmatprep.subr.mxu0 0.0
        %791 = vmatpush1.msra.mxu0 0.0
        %792 = vmatprep.subr.mxu0 0.0
        %793 = vmatpush1.msra.mxu0 0.0
        %794 = vmatprep.subr.mxu0 0.0
        %795 = vmatpush1.msra.mxu0 0.0
        %796 = vmatprep.subr.mxu0 0.0
        %797 = vmatpush1.msra.mxu0 0.0
        %798 = vmatprep.subr.mxu0 0.0
        %799 = vmatpush1.msra.mxu0 0.0
        %800 = vmatprep.subr.mxu0 0.0
        %801 = vmatpush1.msra.mxu0 0.0
        %802 = vmatprep.subr.mxu0 0.0
        %803 = vmatpush1.msra.mxu0 0.0
        %804 = vmatprep.mubr.f32.mxu0 0.0
        %805 = vmatmul.mubr.f32.gmra.mrb[0].mxu0 %v735
        %v806 = vpop.f32.mrb[0].mxu0
        %v807 = vadd.f32 0.0, %v806
        %v808 = vpop.f32.mrb[0].mxu0
        %809 = vmatprep.mubr.f32.mxu0 0.0
        %810 = vmatmul.mubr.f32.gmra.mrb[0].mxu0 %v738
        %v811 = vpop.f32.mrb[0].mxu0
        %v812 = vadd.f32 0.0, %v811
        %v813 = vpop.f32.mrb[0].mxu0
        %814 = vdwg.mxu0
        %v815 = vlaneseq
        %v816 = vand.u32 %v815, 127
        %vm817 = vcmp.lt.s32.totalorder %v816, 8
        %v818 = vsel %vm817, 0.0, -1e+30
        %v819 = vld [vmem:[#allocation2] sm:$0xff]
        %v820 = vld [vmem:[#allocation2 + $0x8] sm:$0xff]
        %v821 = vld [vmem:[#allocation2 + $0x10] sm:$0xff]
        %v822 = vld [vmem:[#allocation2 + $0x18] sm:$0xff]
        %v823 = vld [vmem:[#allocation2 + $0x20] sm:$0xff]
        %v824 = vld [vmem:[#allocation2 + $0x28] sm:$0xff]
        %v825 = vld [vmem:[#allocation2 + $0x30] sm:$0xff]
        %v826 = vld [vmem:[#allocation2 + $0x38] sm:$0xff]
        %v827 = vld [vmem:[#allocation2 + $0x40] sm:$0xff]
        %v828 = vld [vmem:[#allocation2 + $0x48] sm:$0xff]
        %v829 = vld [vmem:[#allocation2 + $0x50] sm:$0xff]
        %v830 = vld [vmem:[#allocation2 + $0x58] sm:$0xff]
        %v831 = vld [vmem:[#allocation2 + $0x60] sm:$0xff]
        %v832 = vld [vmem:[#allocation2 + $0x68] sm:$0xff]
        %v833 = vld [vmem:[#allocation2 + $0x70] sm:$0xff]
        %v834 = vld [vmem:[#allocation2 + $0x78] sm:$0xff]
        %v835 = vld [vmem:[#allocation3] sm:$0xff]
        %v836 = vld [vmem:[#allocation3 + $0x8] sm:$0xff]
        %v837 = vld [vmem:[#allocation3 + $0x10] sm:$0xff]
        %v838 = vld [vmem:[#allocation3 + $0x18] sm:$0xff]
        %v839 = vld [vmem:[#allocation3 + $0x20] sm:$0xff]
        %v840 = vld [vmem:[#allocation3 + $0x28] sm:$0xff]
        %v841 = vld [vmem:[#allocation3 + $0x30] sm:$0xff]
        %v842 = vld [vmem:[#allocation3 + $0x38] sm:$0xff]
        %v843 = vld [vmem:[#allocation3 + $0x40] sm:$0xff]
        %v844 = vld [vmem:[#allocation3 + $0x48] sm:$0xff]
        %v845 = vld [vmem:[#allocation3 + $0x50] sm:$0xff]
        %v846 = vld [vmem:[#allocation3 + $0x58] sm:$0xff]
        %v847 = vld [vmem:[#allocation3 + $0x60] sm:$0xff]
        %v848 = vld [vmem:[#allocation3 + $0x68] sm:$0xff]
        %v849 = vld [vmem:[#allocation3 + $0x70] sm:$0xff]
        %v850 = vld [vmem:[#allocation3 + $0x78] sm:$0xff]
        %vm851 = vcmask 64512
        %v853 = vsel %vm851, %v807, 0
        %v856 = vsel %vm851, %v812, 0
        %v859 = vsel %vm851, %v819, 0
        %v862 = vsel %vm851, %v820, 0
        %v865 = vsel %vm851, %v821, 0
        %v868 = vsel %vm851, %v822, 0
        %v871 = vsel %vm851, %v823, 0
        %v874 = vsel %vm851, %v824, 0
        %v877 = vsel %vm851, %v825, 0
        %v880 = vsel %vm851, %v826, 0
        %v883 = vsel %vm851, %v827, 0
        %v886 = vsel %vm851, %v828, 0
        %v889 = vsel %vm851, %v829, 0
        %v892 = vsel %vm851, %v830, 0
        %v895 = vsel %vm851, %v831, 0
        %v898 = vsel %vm851, %v832, 0
        %v901 = vsel %vm851, %v833, 0
        %v904 = vsel %vm851, %v834, 0
        %906 = vmatprep.subr.mxu0 0.0
        %907 = vmatpush1.xpose.msra.mxu0 %v859
        %908 = vmatprep.subr.mxu0 0.0
        %909 = vmatpush1.xpose.msra.mxu0 %v862
        %910 = vmatprep.subr.mxu0 0.0
        %911 = vmatpush1.xpose.msra.mxu0 %v865
        %912 = vmatprep.subr.mxu0 0.0
        %913 = vmatpush1.xpose.msra.mxu0 %v868
        %914 = vmatprep.subr.mxu0 0.0
        %915 = vmatpush1.xpose.msra.mxu0 %v871
        %916 = vmatprep.subr.mxu0 0.0
        %917 = vmatpush1.xpose.msra.mxu0 %v874
        %918 = vmatprep.subr.mxu0 0.0
        %919 = vmatpush1.xpose.msra.mxu0 %v877
        %920 = vmatprep.subr.mxu0 0.0
        %921 = vmatpush1.xpose.msra.mxu0 %v880
        %922 = vmatprep.subr.mxu0 0.0
        %923 = vmatpush1.xpose.msra.mxu0 %v883
        %924 = vmatprep.subr.mxu0 0.0
        %925 = vmatpush1.xpose.msra.mxu0 %v886
        %926 = vmatprep.subr.mxu0 0.0
        %927 = vmatpush1.xpose.msra.mxu0 %v889
        %928 = vmatprep.subr.mxu0 0.0
        %929 = vmatpush1.xpose.msra.mxu0 %v892
        %930 = vmatprep.subr.mxu0 0.0
        %931 = vmatpush1.xpose.msra.mxu0 %v895
        %932 = vmatprep.subr.mxu0 0.0
        %933 = vmatpush1.xpose.msra.mxu0 %v898
        %934 = vmatprep.subr.mxu0 0.0
        %935 = vmatpush1.xpose.msra.mxu0 %v901
        %936 = vmatprep.subr.mxu0 0.0
        %937 = vmatpush1.xpose.msra.mxu0 %v904
        %938 = vmatprep.subr.mxu0 0.0
        %939 = vmatpush1.xpose.msra.mxu0 0.0
        %940 = vmatprep.subr.mxu0 0.0
        %941 = vmatpush1.xpose.msra.mxu0 0.0
        %942 = vmatprep.subr.mxu0 0.0
        %943 = vmatpush1.xpose.msra.mxu0 0.0
        %944 = vmatprep.subr.mxu0 0.0
        %945 = vmatpush1.xpose.msra.mxu0 0.0
        %946 = vmatprep.subr.mxu0 0.0
        %947 = vmatpush1.xpose.msra.mxu0 0.0
        %948 = vmatprep.subr.mxu0 0.0
        %949 = vmatpush1.xpose.msra.mxu0 0.0
        %950 = vmatprep.subr.mxu0 0.0
        %951 = vmatpush1.xpose.msra.mxu0 0.0
        %952 = vmatprep.subr.mxu0 0.0
        %953 = vmatpush1.xpose.msra.mxu0 0.0
        %954 = vmatprep.subr.mxu0 0.0
        %955 = vmatpush1.xpose.msra.mxu0 0.0
        %956 = vmatprep.subr.mxu0 0.0
        %957 = vmatpush1.xpose.msra.mxu0 0.0
        %958 = vmatprep.subr.mxu0 0.0
        %959 = vmatpush1.xpose.msra.mxu0 0.0
        %960 = vmatprep.subr.mxu0 0.0
        %961 = vmatpush1.xpose.msra.mxu0 0.0
        %962 = vmatprep.subr.mxu0 0.0
        %963 = vmatpush1.xpose.msra.mxu0 0.0
        %964 = vmatprep.subr.mxu0 0.0
        %965 = vmatpush1.xpose.msra.mxu0 0.0
        %966 = vmatprep.subr.mxu0 0.0
        %967 = vmatpush1.xpose.msra.mxu0 0.0
        %968 = vmatprep.subr.mxu0 0.0
        %969 = vmatpush1.xpose.msra.mxu0 0.0
        %970 = vmatprep.mubr.f32.mxu0 0.0
        %971 = vmatmul.mubr.f32.gmra.mrb[0].mxu0 %v853
        %v972 = vpop.f32.mrb[0].mxu0
        %v973 = vadd.f32 %v818, %v972
        %v974 = vpop.f32.mrb[0].mxu0
        %975 = vmatprep.mubr.f32.mxu0 0.0
        %976 = vmatmul.mubr.f32.gmra.mrb[0].mxu0 %v856
        %v977 = vpop.f32.mrb[0].mxu0
        %v978 = vadd.f32 %v818, %v977
        %v979 = vpop.f32.mrb[0].mxu0
        %980 = vdwg.mxu0
        %981 = vmax.xlane.f32.xlu0 %v973
        %v982 = vpop.xlane.xlu0 %981
        %983 = vmax.xlane.f32.xlu0 %v978
        %v984 = vpop.xlane.xlu0 %983
        %v985 = vsub.f32 %v973, %v982
        %v986 = vsub.f32 %v978, %v984
        %v987 = vmul.f32 %v985, 1.442695
        %v988 = vpow.pop %v987
        %v989 = vmul.f32 %v986, 1.442695
        %v990 = vpow.pop %v989
        %991 = vadd.xlane.f32.xlu0 %v988
        %v992 = vpop.xlane.xlu0 %991
        %993 = vadd.xlane.f32.xlu0 %v990
        %v994 = vpop.xlane.xlu0 %993
        %995 = vmatprep.subr.mxu0 0.0
        %996 = vmatpush1.msra.mxu0 %v835
        %997 = vmatprep.subr.mxu0 0.0
        %998 = vmatpush1.msra.mxu0 %v836
        %999 = vmatprep.subr.mxu0 0.0
        %1000 = vmatpush1.msra.mxu0 %v837
        %1001 = vmatprep.subr.mxu0 0.0
        %1002 = vmatpush1.msra.mxu0 %v838
        %1003 = vmatprep.subr.mxu0 0.0
        %1004 = vmatpush1.msra.mxu0 %v839
        %1005 = vmatprep.subr.mxu0 0.0
        %1006 = vmatpush1.msra.mxu0 %v840
        %1007 = vmatprep.subr.mxu0 0.0
        %1008 = vmatpush1.msra.mxu0 %v841
        %1009 = vmatprep.subr.mxu0 0.0
        %1010 = vmatpush1.msra.mxu0 %v842
        %1011 = vmatprep.subr.mxu0 0.0
        %1012 = vmatpush1.msra.mxu0 %v843
        %1013 = vmatprep.subr.mxu0 0.0
        %1014 = vmatpush1.msra.mxu0 %v844
        %1015 = vmatprep.subr.mxu0 0.0
        %1016 = vmatpush1.msra.mxu0 %v845
        %1017 = vmatprep.subr.mxu0 0.0
        %1018 = vmatpush1.msra.mxu0 %v846
        %1019 = vmatprep.subr.mxu0 0.0
        %1020 = vmatpush1.msra.mxu0 %v847
        %1021 = vmatprep.subr.mxu0 0.0
        %1022 = vmatpush1.msra.mxu0 %v848
        %1023 = vmatprep.subr.mxu0 0.0
        %1024 = vmatpush1.msra.mxu0 %v849
        %1025 = vmatprep.subr.mxu0 0.0
        %1026 = vmatpush1.msra.mxu0 %v850
        %1027 = vmatprep.subr.mxu0 0.0
        %1028 = vmatpush1.msra.mxu0 0.0
        %1029 = vmatprep.subr.mxu0 0.0
        %1030 = vmatpush1.msra.mxu0 0.0
        %1031 = vmatprep.subr.mxu0 0.0
        %1032 = vmatpush1.msra.mxu0 0.0
        %1033 = vmatprep.subr.mxu0 0.0
        %1034 = vmatpush1.msra.mxu0 0.0
        %1035 = vmatprep.subr.mxu0 0.0
        %1036 = vmatpush1.msra.mxu0 0.0
        %1037 = vmatprep.subr.mxu0 0.0
        %1038 = vmatpush1.msra.mxu0 0.0
        %1039 = vmatprep.subr.mxu0 0.0
        %1040 = vmatpush1.msra.mxu0 0.0
        %1041 = vmatprep.subr.mxu0 0.0
        %1042 = vmatpush1.msra.mxu0 0.0
        %1043 = vmatprep.subr.mxu0 0.0
        %1044 = vmatpush1.msra.mxu0 0.0
        %1045 = vmatprep.subr.mxu0 0.0
        %1046 = vmatpush1.msra.mxu0 0.0
        %1047 = vmatprep.subr.mxu0 0.0
        %1048 = vmatpush1.msra.mxu0 0.0
        %1049 = vmatprep.subr.mxu0 0.0
        %1050 = vmatpush1.msra.mxu0 0.0
        %1051 = vmatprep.subr.mxu0 0.0
        %1052 = vmatpush1.msra.mxu0 0.0
        %1053 = vmatprep.subr.mxu0 0.0
        %1054 = vmatpush1.msra.mxu0 0.0
        %1055 = vmatprep.subr.mxu0 0.0
        %1056 = vmatpush1.msra.mxu0 0.0
        %1057 = vmatprep.subr.mxu0 0.0
        %1058 = vmatpush1.msra.mxu0 0.0
        %1059 = vmatprep.mubr.f32.mxu0 0.0
        %1060 = vmatmul.mubr.f32.gmra.mrb[0].mxu0 %v988
        %v1061 = vpop.f32.mrb[0].mxu0
        %v1062 = vadd.f32 0.0, %v1061
        %v1063 = vpop.f32.mrb[0].mxu0
        %1064 = vmatprep.mubr.f32.mxu0 0.0
        %1065 = vmatmul.mubr.f32.gmra.mrb[0].mxu0 %v990
        %v1066 = vpop.f32.mrb[0].mxu0
        %v1067 = vadd.f32 0.0, %v1066
        %v1068 = vpop.f32.mrb[0].mxu0
        %1069 = vdwg.mxu0
        %v1070 = vrcp.pop %v992
        %v1071 = vmul.f32 %v1062, %v1070
        %v1072 = vrcp.pop %v994
        %v1073 = vmul.f32 %v1067, %v1072
        %v1074 = vld [vmem:[%s5] sm:$0xff]
        %1075 = vrot.lane.b32.xlu0 %v807, 120
        %v1076 = vpop.permute.xlu0 %1075
        %1077 = vrot.lane.b32.xlu0 %v812, 120
        %v1078 = vpop.permute.xlu0 %1077
        %1079 = vrot.lane.b32.xlu0 %v819, 120
        %v1080 = vpop.permute.xlu0 %1079
        %1081 = vrot.lane.b32.xlu0 %v820, 120
        %v1082 = vpop.permute.xlu0 %1081
        %1083 = vrot.lane.b32.xlu0 %v821, 120
        %v1084 = vpop.permute.xlu0 %1083
        %1085 = vrot.lane.b32.xlu0 %v822, 120
        %v1086 = vpop.permute.xlu0 %1085
        %1087 = vrot.lane.b32.xlu0 %v823, 120
        %v1088 = vpop.permute.xlu0 %1087
        %1089 = vrot.lane.b32.xlu0 %v824, 120
        %v1090 = vpop.permute.xlu0 %1089
        %1091 = vrot.lane.b32.xlu0 %v825, 120
        %v1092 = vpop.permute.xlu0 %1091
        %1093 = vrot.lane.b32.xlu0 %v826, 120
        %v1094 = vpop.permute.xlu0 %1093
        %1095 = vrot.lane.b32.xlu0 %v827, 120
        %v1096 = vpop.permute.xlu0 %1095
        %1097 = vrot.lane.b32.xlu0 %v828, 120
        %v1098 = vpop.permute.xlu0 %1097
        %1099 = vrot.lane.b32.xlu0 %v829, 120
        %v1100 = vpop.permute.xlu0 %1099
        %1101 = vrot.lane.b32.xlu0 %v830, 120
        %v1102 = vpop.permute.xlu0 %1101
        %1103 = vrot.lane.b32.xlu0 %v831, 120
        %v1104 = vpop.permute.xlu0 %1103
        %1105 = vrot.lane.b32.xlu0 %v832, 120
        %v1106 = vpop.permute.xlu0 %1105
        %1107 = vrot.lane.b32.xlu0 %v833, 120
        %v1108 = vpop.permute.xlu0 %1107
        %1109 = vrot.lane.b32.xlu0 %v834, 120
        %v1110 = vpop.permute.xlu0 %1109
        %v1111 = vsel %vm851, %v1076, 0
        %v1113 = vsel %vm851, %v1078, 0
        %v1115 = vsel %vm851, %v1080, 0
        %v1117 = vsel %vm851, %v1082, 0
        %v1119 = vsel %vm851, %v1084, 0
        %v1121 = vsel %vm851, %v1086, 0
        %v1123 = vsel %vm851, %v1088, 0
        %v1125 = vsel %vm851, %v1090, 0
        %v1127 = vsel %vm851, %v1092, 0
        %v1129 = vsel %vm851, %v1094, 0
        %v1131 = vsel %vm851, %v1096, 0
        %v1133 = vsel %vm851, %v1098, 0
        %v1135 = vsel %vm851, %v1100, 0
        %v1137 = vsel %vm851, %v1102, 0
        %v1139 = vsel %vm851, %v1104, 0
        %v1141 = vsel %vm851, %v1106, 0
        %v1143 = vsel %vm851, %v1108, 0
        %v1145 = vsel %vm851, %v1110, 0
        %1147 = vmatprep.subr.mxu0 0.0
        %1148 = vmatpush1.xpose.msra.mxu0 %v1115
        %1149 = vmatprep.subr.mxu0 0.0
        %1150 = vmatpush1.xpose.msra.mxu0 %v1117
        %1151 = vmatprep.subr.mxu0 0.0
        %1152 = vmatpush1.xpose.msra.mxu0 %v1119
        %1153 = vmatprep.subr.mxu0 0.0
        %1154 = vmatpush1.xpose.msra.mxu0 %v1121
        %1155 = vmatprep.subr.mxu0 0.0
        %1156 = vmatpush1.xpose.msra.mxu0 %v1123
        %1157 = vmatprep.subr.mxu0 0.0
        %1158 = vmatpush1.xpose.msra.mxu0 %v1125
        %1159 = vmatprep.subr.mxu0 0.0
        %1160 = vmatpush1.xpose.msra.mxu0 %v1127
        %1161 = vmatprep.subr.mxu0 0.0
        %1162 = vmatpush1.xpose.msra.mxu0 %v1129
        %1163 = vmatprep.subr.mxu0 0.0
        %1164 = vmatpush1.xpose.msra.mxu0 %v1131
        %1165 = vmatprep.subr.mxu0 0.0
        %1166 = vmatpush1.xpose.msra.mxu0 %v1133
        %1167 = vmatprep.subr.mxu0 0.0
        %1168 = vmatpush1.xpose.msra.mxu0 %v1135
        %1169 = vmatprep.subr.mxu0 0.0
        %1170 = vmatpush1.xpose.msra.mxu0 %v1137
        %1171 = vmatprep.subr.mxu0 0.0
        %1172 = vmatpush1.xpose.msra.mxu0 %v1139
        %1173 = vmatprep.subr.mxu0 0.0
        %1174 = vmatpush1.xpose.msra.mxu0 %v1141
        %1175 = vmatprep.subr.mxu0 0.0
        %1176 = vmatpush1.xpose.msra.mxu0 %v1143
        %1177 = vmatprep.subr.mxu0 0.0
        %1178 = vmatpush1.xpose.msra.mxu0 %v1145
        %1179 = vmatprep.subr.mxu0 0.0
        %1180 = vmatpush1.xpose.msra.mxu0 0.0
        %1181 = vmatprep.subr.mxu0 0.0
        %1182 = vmatpush1.xpose.msra.mxu0 0.0
        %1183 = vmatprep.subr.mxu0 0.0
        %1184 = vmatpush1.xpose.msra.mxu0 0.0
        %1185 = vmatprep.subr.mxu0 0.0
        %1186 = vmatpush1.xpose.msra.mxu0 0.0
        %1187 = vmatprep.subr.mxu0 0.0
        %1188 = vmatpush1.xpose.msra.mxu0 0.0
        %1189 = vmatprep.subr.mxu0 0.0
        %1190 = vmatpush1.xpose.msra.mxu0 0.0
        %1191 = vmatprep.subr.mxu0 0.0
        %1192 = vmatpush1.xpose.msra.mxu0 0.0
        %1193 = vmatprep.subr.mxu0 0.0
        %1194 = vmatpush1.xpose.msra.mxu0 0.0
        %1195 = vmatprep.subr.mxu0 0.0
        %1196 = vmatpush1.xpose.msra.mxu0 0.0
        %1197 = vmatprep.subr.mxu0 0.0
        %1198 = vmatpush1.xpose.msra.mxu0 0.0
        %1199 = vmatprep.subr.mxu0 0.0
        %1200 = vmatpush1.xpose.msra.mxu0 0.0
        %1201 = vmatprep.subr.mxu0 0.0
        %1202 = vmatpush1.xpose.msra.mxu0 0.0
        %1203 = vmatprep.subr.mxu0 0.0
        %1204 = vmatpush1.xpose.msra.mxu0 0.0
        %1205 = vmatprep.subr.mxu0 0.0
        %1206 = vmatpush1.xpose.msra.mxu0 0.0
        %1207 = vmatprep.subr.mxu0 0.0
        %1208 = vmatpush1.xpose.msra.mxu0 0.0
        %1209 = vmatprep.subr.mxu0 0.0
        %1210 = vmatpush1.xpose.msra.mxu0 0.0
        %1211 = vmatprep.mubr.f32.mxu0 0.0
        %1212 = vmatmul.mubr.f32.gmra.mrb[0].mxu0 %v1111
        %v1213 = vpop.f32.mrb[0].mxu0
        %v1214 = vadd.f32 %v818, %v1213
        %v1215 = vpop.f32.mrb[0].mxu0
        %1216 = vmatprep.mubr.f32.mxu0 0.0
        %1217 = vmatmul.mubr.f32.gmra.mrb[0].mxu0 %v1113
        %v1218 = vpop.f32.mrb[0].mxu0
        %v1219 = vadd.f32 %v818, %v1218
        %v1220 = vpop.f32.mrb[0].mxu0
        %1221 = vdwg.mxu0
        %1222 = vmax.xlane.f32.xlu0 %v1214
        %v1223 = vpop.xlane.xlu0 %1222
        %1224 = vmax.xlane.f32.xlu0 %v1219
        %v1225 = vpop.xlane.xlu0 %1224
        %v1226 = vsub.f32 %v1214, %v1223
        %v1227 = vsub.f32 %v1219, %v1225
        %v1228 = vmul.f32 %v1226, 1.442695
        %v1229 = vpow.pop %v1228
        %v1230 = vmul.f32 %v1227, 1.442695
        %v1231 = vpow.pop %v1230
        %1232 = vadd.xlane.f32.xlu0 %v1229
        %v1233 = vpop.xlane.xlu0 %1232
        %1234 = vadd.xlane.f32.xlu0 %v1231
        %v1235 = vpop.xlane.xlu0 %1234
        %1252 = vrot.lane.b32.xlu0 %v835, 120
        %v1253 = vpop.permute.xlu0 %1252
        %1254 = vrot.lane.b32.xlu0 %v836, 120
        %v1255 = vpop.permute.xlu0 %1254
        %1256 = vrot.lane.b32.xlu0 %v837, 120
        %v1257 = vpop.permute.xlu0 %1256
        %1258 = vrot.lane.b32.xlu0 %v838, 120
        %v1259 = vpop.permute.xlu0 %1258
        %1260 = vrot.lane.b32.xlu0 %v839, 120
        %v1261 = vpop.permute.xlu0 %1260
        %1262 = vrot.lane.b32.xlu0 %v840, 120
        %v1263 = vpop.permute.xlu0 %1262
        %1264 = vrot.lane.b32.xlu0 %v841, 120
        %v1265 = vpop.permute.xlu0 %1264
        %1266 = vrot.lane.b32.xlu0 %v842, 120
        %v1267 = vpop.permute.xlu0 %1266
        %1268 = vrot.lane.b32.xlu0 %v843, 120
        %v1269 = vpop.permute.xlu0 %1268
        %1270 = vrot.lane.b32.xlu0 %v844, 120
        %v1271 = vpop.permute.xlu0 %1270
        %1272 = vrot.lane.b32.xlu0 %v845, 120
        %v1273 = vpop.permute.xlu0 %1272
        %1274 = vrot.lane.b32.xlu0 %v846, 120
        %v1275 = vpop.permute.xlu0 %1274
        %1276 = vrot.lane.b32.xlu0 %v847, 120
        %v1277 = vpop.permute.xlu0 %1276
        %1278 = vrot.lane.b32.xlu0 %v848, 120
        %v1279 = vpop.permute.xlu0 %1278
        %1280 = vrot.lane.b32.xlu0 %v849, 120
        %v1281 = vpop.permute.xlu0 %1280
        %1282 = vrot.lane.b32.xlu0 %v850, 120
        %v1283 = vpop.permute.xlu0 %1282
        %1300 = vmatprep.subr.mxu0 0.0
        %1301 = vmatpush1.msra.mxu0 %v1253
        %1302 = vmatprep.subr.mxu0 0.0
        %1303 = vmatpush1.msra.mxu0 %v1255
        %1304 = vmatprep.subr.mxu0 0.0
        %1305 = vmatpush1.msra.mxu0 %v1257
        %1306 = vmatprep.subr.mxu0 0.0
        %1307 = vmatpush1.msra.mxu0 %v1259
        %1308 = vmatprep.subr.mxu0 0.0
        %1309 = vmatpush1.msra.mxu0 %v1261
        %1310 = vmatprep.subr.mxu0 0.0
        %1311 = vmatpush1.msra.mxu0 %v1263
        %1312 = vmatprep.subr.mxu0 0.0
        %1313 = vmatpush1.msra.mxu0 %v1265
        %1314 = vmatprep.subr.mxu0 0.0
        %1315 = vmatpush1.msra.mxu0 %v1267
        %1316 = vmatprep.subr.mxu0 0.0
        %1317 = vmatpush1.msra.mxu0 %v1269
        %1318 = vmatprep.subr.mxu0 0.0
        %1319 = vmatpush1.msra.mxu0 %v1271
        %1320 = vmatprep.subr.mxu0 0.0
        %1321 = vmatpush1.msra.mxu0 %v1273
        %1322 = vmatprep.subr.mxu0 0.0
        %1323 = vmatpush1.msra.mxu0 %v1275
        %1324 = vmatprep.subr.mxu0 0.0
        %1325 = vmatpush1.msra.mxu0 %v1277
        %1326 = vmatprep.subr.mxu0 0.0
        %1327 = vmatpush1.msra.mxu0 %v1279
        %1328 = vmatprep.subr.mxu0 0.0
        %1329 = vmatpush1.msra.mxu0 %v1281
        %1330 = vmatprep.subr.mxu0 0.0
        %1331 = vmatpush1.msra.mxu0 %v1283
        %1332 = vmatprep.subr.mxu0 0.0
        %1333 = vmatpush1.msra.mxu0 0.0
        %1334 = vmatprep.subr.mxu0 0.0
        %1335 = vmatpush1.msra.mxu0 0.0
        %1336 = vmatprep.subr.mxu0 0.0
        %1337 = vmatpush1.msra.mxu0 0.0
        %1338 = vmatprep.subr.mxu0 0.0
        %1339 = vmatpush1.msra.mxu0 0.0
        %1340 = vmatprep.subr.mxu0 0.0
        %1341 = vmatpush1.msra.mxu0 0.0
        %1342 = vmatprep.subr.mxu0 0.0
        %1343 = vmatpush1.msra.mxu0 0.0
        %1344 = vmatprep.subr.mxu0 0.0
        %1345 = vmatpush1.msra.mxu0 0.0
        %1346 = vmatprep.subr.mxu0 0.0
        %1347 = vmatpush1.msra.mxu0 0.0
        %1348 = vmatprep.subr.mxu0 0.0
        %1349 = vmatpush1.msra.mxu0 0.0
        %1350 = vmatprep.subr.mxu0 0.0
        %1351 = vmatpush1.msra.mxu0 0.0
        %1352 = vmatprep.subr.mxu0 0.0
        %1353 = vmatpush1.msra.mxu0 0.0
        %1354 = vmatprep.subr.mxu0 0.0
        %1355 = vmatpush1.msra.mxu0 0.0
        %1356 = vmatprep.subr.mxu0 0.0
        %1357 = vmatpush1.msra.mxu0 0.0
        %1358 = vmatprep.subr.mxu0 0.0
        %1359 = vmatpush1.msra.mxu0 0.0
        %1360 = vmatprep.subr.mxu0 0.0
        %1361 = vmatpush1.msra.mxu0 0.0
        %1362 = vmatprep.subr.mxu0 0.0
        %1363 = vmatpush1.msra.mxu0 0.0
        %1364 = vmatprep.mubr.f32.mxu0 0.0
        %1365 = vmatmul.mubr.f32.gmra.mrb[0].mxu0 %v1229
        %v1366 = vpop.f32.mrb[0].mxu0
        %v1367 = vadd.f32 0.0, %v1366
        %v1368 = vpop.f32.mrb[0].mxu0
        %1369 = vmatprep.mubr.f32.mxu0 0.0
        %1370 = vmatmul.mubr.f32.gmra.mrb[0].mxu0 %v1231
        %v1371 = vpop.f32.mrb[0].mxu0
        %v1372 = vadd.f32 0.0, %v1371
        %v1373 = vpop.f32.mrb[0].mxu0
        %1374 = vdwg.mxu0
        %v1375 = vrcp.pop %v1233
        %v1376 = vmul.f32 %v1367, %v1375
        %v1377 = vrcp.pop %v1235
        %v1378 = vmul.f32 %v1372, %v1377
        %v1379 = vld [vmem:[%s5 + $0x8] sm:$0xff]
        %v1381 = vsel %vm851, %v1376, 0
        %v1384 = vsel %vm851, %v1378, 0
        %1386 = vmatprep.subr.mxu0 0.0
        %1387 = vmatpush1.msra.mxu0 %v1379
        %1388 = vmatprep.subr.mxu0 0.0
        %1389 = vmatpush1.msra.mxu0 0.0
        %1390 = vmatprep.subr.mxu0 0.0
        %1391 = vmatpush1.msra.mxu0 0.0
        %1392 = vmatprep.subr.mxu0 0.0
        %1393 = vmatpush1.msra.mxu0 0.0
        %1394 = vmatprep.subr.mxu0 0.0
        %1395 = vmatpush1.msra.mxu0 0.0
        %1396 = vmatprep.subr.mxu0 0.0
        %1397 = vmatpush1.msra.mxu0 0.0
        %1398 = vmatprep.subr.mxu0 0.0
        %1399 = vmatpush1.msra.mxu0 0.0
        %1400 = vmatprep.subr.mxu0 0.0
        %1401 = vmatpush1.msra.mxu0 0.0
        %1402 = vmatprep.subr.mxu0 0.0
        %1403 = vmatpush1.msra.mxu0 0.0
        %1404 = vmatprep.subr.mxu0 0.0
        %1405 = vmatpush1.msra.mxu0 0.0
        %1406 = vmatprep.subr.mxu0 0.0
        %1407 = vmatpush1.msra.mxu0 0.0
        %1408 = vmatprep.subr.mxu0 0.0
        %1409 = vmatpush1.msra.mxu0 0.0
        %1410 = vmatprep.subr.mxu0 0.0
        %1411 = vmatpush1.msra.mxu0 0.0
        %1412 = vmatprep.subr.mxu0 0.0
        %1413 = vmatpush1.msra.mxu0 0.0
        %1414 = vmatprep.subr.mxu0 0.0
        %1415 = vmatpush1.msra.mxu0 0.0
        %1416 = vmatprep.subr.mxu0 0.0
        %1417 = vmatpush1.msra.mxu0 0.0
        %1418 = vmatprep.subr.mxu0 0.0
        %1419 = vmatpush1.msra.mxu0 0.0
        %1420 = vmatprep.subr.mxu0 0.0
        %1421 = vmatpush1.msra.mxu0 0.0
        %1422 = vmatprep.subr.mxu0 0.0
        %1423 = vmatpush1.msra.mxu0 0.0
        %1424 = vmatprep.subr.mxu0 0.0
        %1425 = vmatpush1.msra.mxu0 0.0
        %1426 = vmatprep.subr.mxu0 0.0
        %1427 = vmatpush1.msra.mxu0 0.0
        %1428 = vmatprep.subr.mxu0 0.0
        %1429 = vmatpush1.msra.mxu0 0.0
        %1430 = vmatprep.subr.mxu0 0.0
        %1431 = vmatpush1.msra.mxu0 0.0
        %1432 = vmatprep.subr.mxu0 0.0
        %1433 = vmatpush1.msra.mxu0 0.0
        %1434 = vmatprep.subr.mxu0 0.0
        %1435 = vmatpush1.msra.mxu0 0.0
        %1436 = vmatprep.subr.mxu0 0.0
        %1437 = vmatpush1.msra.mxu0 0.0
        %1438 = vmatprep.subr.mxu0 0.0
        %1439 = vmatpush1.msra.mxu0 0.0
        %1440 = vmatprep.subr.mxu0 0.0
        %1441 = vmatpush1.msra.mxu0 0.0
        %1442 = vmatprep.subr.mxu0 0.0
        %1443 = vmatpush1.msra.mxu0 0.0
        %1444 = vmatprep.subr.mxu0 0.0
        %1445 = vmatpush1.msra.mxu0 0.0
        %1446 = vmatprep.subr.mxu0 0.0
        %1447 = vmatpush1.msra.mxu0 0.0
        %1448 = vmatprep.subr.mxu0 0.0
        %1449 = vmatpush1.msra.mxu0 0.0
        %1450 = vmatprep.mubr.f32.mxu0 0.0
        %1451 = vmatmul.mubr.f32.gmra.mrb[0].mxu0 %v1381
        %v1452 = vpop.f32.mrb[0].mxu0
        %v1453 = vadd.f32 0.0, %v1452
        %v1454 = vpop.f32.mrb[0].mxu0
        %1455 = vmatprep.mubr.f32.mxu0 0.0
        %1456 = vmatmul.mubr.f32.gmra.mrb[0].mxu0 %v1384
        %v1457 = vpop.f32.mrb[0].mxu0
        %v1458 = vadd.f32 0.0, %v1457
        %v1459 = vpop.f32.mrb[0].mxu0
        %1460 = vdwg.mxu0
        %v1462 = vsel %vm851, %v1071, 0
        %v1465 = vsel %vm851, %v1073, 0
        %1467 = vmatprep.subr.mxu0 0.0
        %1468 = vmatpush1.msra.mxu0 %v1074
        %1469 = vmatprep.subr.mxu0 0.0
        %1470 = vmatpush1.msra.mxu0 0.0
        %1471 = vmatprep.subr.mxu0 0.0
        %1472 = vmatpush1.msra.mxu0 0.0
        %1473 = vmatprep.subr.mxu0 0.0
        %1474 = vmatpush1.msra.mxu0 0.0
        %1475 = vmatprep.subr.mxu0 0.0
        %1476 = vmatpush1.msra.mxu0 0.0
        %1477 = vmatprep.subr.mxu0 0.0
        %1478 = vmatpush1.msra.mxu0 0.0
        %1479 = vmatprep.subr.mxu0 0.0
        %1480 = vmatpush1.msra.mxu0 0.0
        %1481 = vmatprep.subr.mxu0 0.0
        %1482 = vmatpush1.msra.mxu0 0.0
        %1483 = vmatprep.subr.mxu0 0.0
        %1484 = vmatpush1.msra.mxu0 0.0
        %1485 = vmatprep.subr.mxu0 0.0
        %1486 = vmatpush1.msra.mxu0 0.0
        %1487 = vmatprep.subr.mxu0 0.0
        %1488 = vmatpush1.msra.mxu0 0.0
        %1489 = vmatprep.subr.mxu0 0.0
        %1490 = vmatpush1.msra.mxu0 0.0
        %1491 = vmatprep.subr.mxu0 0.0
        %1492 = vmatpush1.msra.mxu0 0.0
        %1493 = vmatprep.subr.mxu0 0.0
        %1494 = vmatpush1.msra.mxu0 0.0
        %1495 = vmatprep.subr.mxu0 0.0
        %1496 = vmatpush1.msra.mxu0 0.0
        %1497 = vmatprep.subr.mxu0 0.0
        %1498 = vmatpush1.msra.mxu0 0.0
        %1499 = vmatprep.subr.mxu0 0.0
        %1500 = vmatpush1.msra.mxu0 0.0
        %1501 = vmatprep.subr.mxu0 0.0
        %1502 = vmatpush1.msra.mxu0 0.0
        %1503 = vmatprep.subr.mxu0 0.0
        %1504 = vmatpush1.msra.mxu0 0.0
        %1505 = vmatprep.subr.mxu0 0.0
        %1506 = vmatpush1.msra.mxu0 0.0
        %1507 = vmatprep.subr.mxu0 0.0
        %1508 = vmatpush1.msra.mxu0 0.0
        %1509 = vmatprep.subr.mxu0 0.0
        %1510 = vmatpush1.msra.mxu0 0.0
        %1511 = vmatprep.subr.mxu0 0.0
        %1512 = vmatpush1.msra.mxu0 0.0
        %1513 = vmatprep.subr.mxu0 0.0
        %1514 = vmatpush1.msra.mxu0 0.0
        %1515 = vmatprep.subr.mxu0 0.0
        %1516 = vmatpush1.msra.mxu0 0.0
        %1517 = vmatprep.subr.mxu0 0.0
        %1518 = vmatpush1.msra.mxu0 0.0
        %1519 = vmatprep.subr.mxu0 0.0
        %1520 = vmatpush1.msra.mxu0 0.0
        %1521 = vmatprep.subr.mxu0 0.0
        %1522 = vmatpush1.msra.mxu0 0.0
        %1523 = vmatprep.subr.mxu0 0.0
        %1524 = vmatpush1.msra.mxu0 0.0
        %1525 = vmatprep.subr.mxu0 0.0
        %1526 = vmatpush1.msra.mxu0 0.0
        %1527 = vmatprep.subr.mxu0 0.0
        %1528 = vmatpush1.msra.mxu0 0.0
        %1529 = vmatprep.subr.mxu0 0.0
        %1530 = vmatpush1.msra.mxu0 0.0
        %1531 = vmatprep.mubr.f32.mxu0 0.0
        %1532 = vmatmul.mubr.f32.gmra.mrb[0].mxu0 %v1462
        %v1533 = vpop.f32.mrb[0].mxu0
        %v1534 = vadd.f32 %v1453, %v1533
        %v1535 = vpop.f32.mrb[0].mxu0
        %1536 = vmatprep.mubr.f32.mxu0 0.0
        %1537 = vmatmul.mubr.f32.gmra.mrb[0].mxu0 %v1465
        %v1538 = vpop.f32.mrb[0].mxu0
        %v1539 = vadd.f32 %v1458, %v1538
        %v1540 = vpop.f32.mrb[0].mxu0
        %1541 = vdwg.mxu0
        %1542 = vrot.lane.b32.xlu0 %v807, 112
        %v1543 = vpop.permute.xlu0 %1542
        %1544 = vrot.lane.b32.xlu0 %v812, 112
        %v1545 = vpop.permute.xlu0 %1544
        %1546 = vrot.lane.b32.xlu0 %v819, 112
        %v1547 = vpop.permute.xlu0 %1546
        %1548 = vrot.lane.b32.xlu0 %v820, 112
        %v1549 = vpop.permute.xlu0 %1548
        %1550 = vrot.lane.b32.xlu0 %v821, 112
        %v1551 = vpop.permute.xlu0 %1550
        %1552 = vrot.lane.b32.xlu0 %v822, 112
        %v1553 = vpop.permute.xlu0 %1552
        %1554 = vrot.lane.b32.xlu0 %v823, 112
        %v1555 = vpop.permute.xlu0 %1554
        %1556 = vrot.lane.b32.xlu0 %v824, 112
        %v1557 = vpop.permute.xlu0 %1556
        %1558 = vrot.lane.b32.xlu0 %v825, 112
        %v1559 = vpop.permute.xlu0 %1558
        %1560 = vrot.lane.b32.xlu0 %v826, 112
        %v1561 = vpop.permute.xlu0 %1560
        %1562 = vrot.lane.b32.xlu0 %v827, 112
        %v1563 = vpop.permute.xlu0 %1562
        %1564 = vrot.lane.b32.xlu0 %v828, 112
        %v1565 = vpop.permute.xlu0 %1564
        %1566 = vrot.lane.b32.xlu0 %v829, 112
        %v1567 = vpop.permute.xlu0 %1566
        %1568 = vrot.lane.b32.xlu0 %v830, 112
        %v1569 = vpop.permute.xlu0 %1568
        %1570 = vrot.lane.b32.xlu0 %v831, 112
        %v1571 = vpop.permute.xlu0 %1570
        %1572 = vrot.lane.b32.xlu0 %v832, 112
        %v1573 = vpop.permute.xlu0 %1572
        %1574 = vrot.lane.b32.xlu0 %v833, 112
        %v1575 = vpop.permute.xlu0 %1574
        %1576 = vrot.lane.b32.xlu0 %v834, 112
        %v1577 = vpop.permute.xlu0 %1576
        %v1578 = vsel %vm851, %v1543, 0
        %v1580 = vsel %vm851, %v1545, 0
        %v1582 = vsel %vm851, %v1547, 0
        %v1584 = vsel %vm851, %v1549, 0
        %v1586 = vsel %vm851, %v1551, 0
        %v1588 = vsel %vm851, %v1553, 0
        %v1590 = vsel %vm851, %v1555, 0
        %v1592 = vsel %vm851, %v1557, 0
        %v1594 = vsel %vm851, %v1559, 0
        %v1596 = vsel %vm851, %v1561, 0
        %v1598 = vsel %vm851, %v1563, 0
        %v1600 = vsel %vm851, %v1565, 0
        %v1602 = vsel %vm851, %v1567, 0
        %v1604 = vsel %vm851, %v1569, 0
        %v1606 = vsel %vm851, %v1571, 0
        %v1608 = vsel %vm851, %v1573, 0
        %v1610 = vsel %vm851, %v1575, 0
        %v1612 = vsel %vm851, %v1577, 0
        %1614 = vmatprep.subr.mxu0 0.0
        %1615 = vmatpush1.xpose.msra.mxu0 %v1582
        %1616 = vmatprep.subr.mxu0 0.0
        %1617 = vmatpush1.xpose.msra.mxu0 %v1584
        %1618 = vmatprep.subr.mxu0 0.0
        %1619 = vmatpush1.xpose.msra.mxu0 %v1586
        %1620 = vmatprep.subr.mxu0 0.0
        %1621 = vmatpush1.xpose.msra.mxu0 %v1588
        %1622 = vmatprep.subr.mxu0 0.0
        %1623 = vmatpush1.xpose.msra.mxu0 %v1590
        %1624 = vmatprep.subr.mxu0 0.0
        %1625 = vmatpush1.xpose.msra.mxu0 %v1592
        %1626 = vmatprep.subr.mxu0 0.0
        %1627 = vmatpush1.xpose.msra.mxu0 %v1594
        %1628 = vmatprep.subr.mxu0 0.0
        %1629 = vmatpush1.xpose.msra.mxu0 %v1596
        %1630 = vmatprep.subr.mxu0 0.0
        %1631 = vmatpush1.xpose.msra.mxu0 %v1598
        %1632 = vmatprep.subr.mxu0 0.0
        %1633 = vmatpush1.xpose.msra.mxu0 %v1600
        %1634 = vmatprep.subr.mxu0 0.0
        %1635 = vmatpush1.xpose.msra.mxu0 %v1602
        %1636 = vmatprep.subr.mxu0 0.0
        %1637 = vmatpush1.xpose.msra.mxu0 %v1604
        %1638 = vmatprep.subr.mxu0 0.0
        %1639 = vmatpush1.xpose.msra.mxu0 %v1606
        %1640 = vmatprep.subr.mxu0 0.0
        %1641 = vmatpush1.xpose.msra.mxu0 %v1608
        %1642 = vmatprep.subr.mxu0 0.0
        %1643 = vmatpush1.xpose.msra.mxu0 %v1610
        %1644 = vmatprep.subr.mxu0 0.0
        %1645 = vmatpush1.xpose.msra.mxu0 %v1612
        %1646 = vmatprep.subr.mxu0 0.0
        %1647 = vmatpush1.xpose.msra.mxu0 0.0
        %1648 = vmatprep.subr.mxu0 0.0
        %1649 = vmatpush1.xpose.msra.mxu0 0.0
        %1650 = vmatprep.subr.mxu0 0.0
        %1651 = vmatpush1.xpose.msra.mxu0 0.0
        %1652 = vmatprep.subr.mxu0 0.0
        %1653 = vmatpush1.xpose.msra.mxu0 0.0
        %1654 = vmatprep.subr.mxu0 0.0
        %1655 = vmatpush1.xpose.msra.mxu0 0.0
        %1656 = vmatprep.subr.mxu0 0.0
        %1657 = vmatpush1.xpose.msra.mxu0 0.0
        %1658 = vmatprep.subr.mxu0 0.0
        %1659 = vmatpush1.xpose.msra.mxu0 0.0
        %1660 = vmatprep.subr.mxu0 0.0
        %1661 = vmatpush1.xpose.msra.mxu0 0.0
        %1662 = vmatprep.subr.mxu0 0.0
        %1663 = vmatpush1.xpose.msra.mxu0 0.0
        %1664 = vmatprep.subr.mxu0 0.0
        %1665 = vmatpush1.xpose.msra.mxu0 0.0
        %1666 = vmatprep.subr.mxu0 0.0
        %1667 = vmatpush1.xpose.msra.mxu0 0.0
        %1668 = vmatprep.subr.mxu0 0.0
        %1669 = vmatpush1.xpose.msra.mxu0 0.0
        %1670 = vmatprep.subr.mxu0 0.0
        %1671 = vmatpush1.xpose.msra.mxu0 0.0
        %1672 = vmatprep.subr.mxu0 0.0
        %1673 = vmatpush1.xpose.msra.mxu0 0.0
        %1674 = vmatprep.subr.mxu0 0.0
        %1675 = vmatpush1.xpose.msra.mxu0 0.0
        %1676 = vmatprep.subr.mxu0 0.0
        %1677 = vmatpush1.xpose.msra.mxu0 0.0
        %1678 = vmatprep.mubr.f32.mxu0 0.0
        %1679 = vmatmul.mubr.f32.gmra.mrb[0].mxu0 %v1578
        %v1680 = vpop.f32.mrb[0].mxu0
        %v1681 = vadd.f32 %v818, %v1680
        %v1682 = vpop.f32.mrb[0].mxu0
        %1683 = vmatprep.mubr.f32.mxu0 0.0
        %1684 = vmatmul.mubr.f32.gmra.mrb[0].mxu0 %v1580
        %v1685 = vpop.f32.mrb[0].mxu0
        %v1686 = vadd.f32 %v818, %v1685
        %v1687 = vpop.f32.mrb[0].mxu0
        %1688 = vdwg.mxu0
        %1689 = vmax.xlane.f32.xlu0 %v1681
        %v1690 = vpop.xlane.xlu0 %1689
        %1691 = vmax.xlane.f32.xlu0 %v1686
        %v1692 = vpop.xlane.xlu0 %1691
        %v1693 = vsub.f32 %v1681, %v1690
        %v1694 = vsub.f32 %v1686, %v1692
        %v1695 = vmul.f32 %v1693, 1.442695
        %v1696 = vpow.pop %v1695
        %v1697 = vmul.f32 %v1694, 1.442695
        %v1698 = vpow.pop %v1697
        %1699 = vadd.xlane.f32.xlu0 %v1696
        %v1700 = vpop.xlane.xlu0 %1699
        %1701 = vadd.xlane.f32.xlu0 %v1698
        %v1702 = vpop.xlane.xlu0 %1701
        %1703 = vrot.lane.b32.xlu0 %v835, 112
        %v1704 = vpop.permute.xlu0 %1703
        %1705 = vrot.lane.b32.xlu0 %v836, 112
        %v1706 = vpop.permute.xlu0 %1705
        %1707 = vrot.lane.b32.xlu0 %v837, 112
        %v1708 = vpop.permute.xlu0 %1707
        %1709 = vrot.lane.b32.xlu0 %v838, 112
        %v1710 = vpop.permute.xlu0 %1709
        %1711 = vrot.lane.b32.xlu0 %v839, 112
        %v1712 = vpop.permute.xlu0 %1711
        %1713 = vrot.lane.b32.xlu0 %v840, 112
        %v1714 = vpop.permute.xlu0 %1713
        %1715 = vrot.lane.b32.xlu0 %v841, 112
        %v1716 = vpop.permute.xlu0 %1715
        %1717 = vrot.lane.b32.xlu0 %v842, 112
        %v1718 = vpop.permute.xlu0 %1717
        %1719 = vrot.lane.b32.xlu0 %v843, 112
        %v1720 = vpop.permute.xlu0 %1719
        %1721 = vrot.lane.b32.xlu0 %v844, 112
        %v1722 = vpop.permute.xlu0 %1721
        %1723 = vrot.lane.b32.xlu0 %v845, 112
        %v1724 = vpop.permute.xlu0 %1723
        %1725 = vrot.lane.b32.xlu0 %v846, 112
        %v1726 = vpop.permute.xlu0 %1725
        %1727 = vrot.lane.b32.xlu0 %v847, 112
        %v1728 = vpop.permute.xlu0 %1727
        %1729 = vrot.lane.b32.xlu0 %v848, 112
        %v1730 = vpop.permute.xlu0 %1729
        %1731 = vrot.lane.b32.xlu0 %v849, 112
        %v1732 = vpop.permute.xlu0 %1731
        %1733 = vrot.lane.b32.xlu0 %v850, 112
        %v1734 = vpop.permute.xlu0 %1733
        %1751 = vmatprep.subr.mxu0 0.0
        %1752 = vmatpush1.msra.mxu0 %v1704
        %1753 = vmatprep.subr.mxu0 0.0
        %1754 = vmatpush1.msra.mxu0 %v1706
        %1755 = vmatprep.subr.mxu0 0.0
        %1756 = vmatpush1.msra.mxu0 %v1708
        %1757 = vmatprep.subr.mxu0 0.0
        %1758 = vmatpush1.msra.mxu0 %v1710
        %1759 = vmatprep.subr.mxu0 0.0
        %1760 = vmatpush1.msra.mxu0 %v1712
        %1761 = vmatprep.subr.mxu0 0.0
        %1762 = vmatpush1.msra.mxu0 %v1714
        %1763 = vmatprep.subr.mxu0 0.0
        %1764 = vmatpush1.msra.mxu0 %v1716
        %1765 = vmatprep.subr.mxu0 0.0
        %1766 = vmatpush1.msra.mxu0 %v1718
        %1767 = vmatprep.subr.mxu0 0.0
        %1768 = vmatpush1.msra.mxu0 %v1720
        %1769 = vmatprep.subr.mxu0 0.0
        %1770 = vmatpush1.msra.mxu0 %v1722
        %1771 = vmatprep.subr.mxu0 0.0
        %1772 = vmatpush1.msra.mxu0 %v1724
        %1773 = vmatprep.subr.mxu0 0.0
        %1774 = vmatpush1.msra.mxu0 %v1726
        %1775 = vmatprep.subr.mxu0 0.0
        %1776 = vmatpush1.msra.mxu0 %v1728
        %1777 = vmatprep.subr.mxu0 0.0
        %1778 = vmatpush1.msra.mxu0 %v1730
        %1779 = vmatprep.subr.mxu0 0.0
        %1780 = vmatpush1.msra.mxu0 %v1732
        %1781 = vmatprep.subr.mxu0 0.0
        %1782 = vmatpush1.msra.mxu0 %v1734
        %1783 = vmatprep.subr.mxu0 0.0
        %1784 = vmatpush1.msra.mxu0 0.0
        %1785 = vmatprep.subr.mxu0 0.0
        %1786 = vmatpush1.msra.mxu0 0.0
        %1787 = vmatprep.subr.mxu0 0.0
        %1788 = vmatpush1.msra.mxu0 0.0
        %1789 = vmatprep.subr.mxu0 0.0
        %1790 = vmatpush1.msra.mxu0 0.0
        %1791 = vmatprep.subr.mxu0 0.0
        %1792 = vmatpush1.msra.mxu0 0.0
        %1793 = vmatprep.subr.mxu0 0.0
        %1794 = vmatpush1.msra.mxu0 0.0
        %1795 = vmatprep.subr.mxu0 0.0
        %1796 = vmatpush1.msra.mxu0 0.0
        %1797 = vmatprep.subr.mxu0 0.0
        %1798 = vmatpush1.msra.mxu0 0.0
        %1799 = vmatprep.subr.mxu0 0.0
        %1800 = vmatpush1.msra.mxu0 0.0
        %1801 = vmatprep.subr.mxu0 0.0
        %1802 = vmatpush1.msra.mxu0 0.0
        %1803 = vmatprep.subr.mxu0 0.0
        %1804 = vmatpush1.msra.mxu0 0.0
        %1805 = vmatprep.subr.mxu0 0.0
        %1806 = vmatpush1.msra.mxu0 0.0
        %1807 = vmatprep.subr.mxu0 0.0
        %1808 = vmatpush1.msra.mxu0 0.0
        %1809 = vmatprep.subr.mxu0 0.0
        %1810 = vmatpush1.msra.mxu0 0.0
        %1811 = vmatprep.subr.mxu0 0.0
        %1812 = vmatpush1.msra.mxu0 0.0
        %1813 = vmatprep.subr.mxu0 0.0
        %1814 = vmatpush1.msra.mxu0 0.0
        %1815 = vmatprep.mubr.f32.mxu0 0.0
        %1816 = vmatmul.mubr.f32.gmra.mrb[0].mxu0 %v1696
        %v1817 = vpop.f32.mrb[0].mxu0
        %v1818 = vadd.f32 0.0, %v1817
        %v1819 = vpop.f32.mrb[0].mxu0
        %1820 = vmatprep.mubr.f32.mxu0 0.0
        %1821 = vmatmul.mubr.f32.gmra.mrb[0].mxu0 %v1698
        %v1822 = vpop.f32.mrb[0].mxu0
        %v1823 = vadd.f32 0.0, %v1822
        %v1824 = vpop.f32.mrb[0].mxu0
        %1825 = vdwg.mxu0
        %v1826 = vrcp.pop %v1700
        %v1827 = vmul.f32 %v1818, %v1826
        %v1828 = vrcp.pop %v1702
        %v1829 = vmul.f32 %v1823, %v1828
        %v1830 = vld [vmem:[%s5 + $0x10] sm:$0xff]
        %v1832 = vsel %vm851, %v1827, 0
        %v1835 = vsel %vm851, %v1829, 0
        %1837 = vmatprep.subr.mxu0 0.0
        %1838 = vmatpush1.msra.mxu0 %v1830
        %1839 = vmatprep.subr.mxu0 0.0
        %1840 = vmatpush1.msra.mxu0 0.0
        %1841 = vmatprep.subr.mxu0 0.0
        %1842 = vmatpush1.msra.mxu0 0.0
        %1843 = vmatprep.subr.mxu0 0.0
        %1844 = vmatpush1.msra.mxu0 0.0
        %1845 = vmatprep.subr.mxu0 0.0
        %1846 = vmatpush1.msra.mxu0 0.0
        %1847 = vmatprep.subr.mxu0 0.0
        %1848 = vmatpush1.msra.mxu0 0.0
        %1849 = vmatprep.subr.mxu0 0.0
        %1850 = vmatpush1.msra.mxu0 0.0
        %1851 = vmatprep.subr.mxu0 0.0
        %1852 = vmatpush1.msra.mxu0 0.0
        %1853 = vmatprep.subr.mxu0 0.0
        %1854 = vmatpush1.msra.mxu0 0.0
        %1855 = vmatprep.subr.mxu0 0.0
        %1856 = vmatpush1.msra.mxu0 0.0
        %1857 = vmatprep.subr.mxu0 0.0
        %1858 = vmatpush1.msra.mxu0 0.0
        %1859 = vmatprep.subr.mxu0 0.0
        %1860 = vmatpush1.msra.mxu0 0.0
        %1861 = vmatprep.subr.mxu0 0.0
        %1862 = vmatpush1.msra.mxu0 0.0
        %1863 = vmatprep.subr.mxu0 0.0
        %1864 = vmatpush1.msra.mxu0 0.0
        %1865 = vmatprep.subr.mxu0 0.0
        %1866 = vmatpush1.msra.mxu0 0.0
        %1867 = vmatprep.subr.mxu0 0.0
        %1868 = vmatpush1.msra.mxu0 0.0
        %1869 = vmatprep.subr.mxu0 0.0
        %1870 = vmatpush1.msra.mxu0 0.0
        %1871 = vmatprep.subr.mxu0 0.0
        %1872 = vmatpush1.msra.mxu0 0.0
        %1873 = vmatprep.subr.mxu0 0.0
        %1874 = vmatpush1.msra.mxu0 0.0
        %1875 = vmatprep.subr.mxu0 0.0
        %1876 = vmatpush1.msra.mxu0 0.0
        %1877 = vmatprep.subr.mxu0 0.0
        %1878 = vmatpush1.msra.mxu0 0.0
        %1879 = vmatprep.subr.mxu0 0.0
        %1880 = vmatpush1.msra.mxu0 0.0
        %1881 = vmatprep.subr.mxu0 0.0
        %1882 = vmatpush1.msra.mxu0 0.0
        %1883 = vmatprep.subr.mxu0 0.0
        %1884 = vmatpush1.msra.mxu0 0.0
        %1885 = vmatprep.subr.mxu0 0.0
        %1886 = vmatpush1.msra.mxu0 0.0
        %1887 = vmatprep.subr.mxu0 0.0
        %1888 = vmatpush1.msra.mxu0 0.0
        %1889 = vmatprep.subr.mxu0 0.0
        %1890 = vmatpush1.msra.mxu0 0.0
        %1891 = vmatprep.subr.mxu0 0.0
        %1892 = vmatpush1.msra.mxu0 0.0
        %1893 = vmatprep.subr.mxu0 0.0
        %1894 = vmatpush1.msra.mxu0 0.0
        %1895 = vmatprep.subr.mxu0 0.0
        %1896 = vmatpush1.msra.mxu0 0.0
        %1897 = vmatprep.subr.mxu0 0.0
        %1898 = vmatpush1.msra.mxu0 0.0
        %1899 = vmatprep.subr.mxu0 0.0
        %1900 = vmatpush1.msra.mxu0 0.0
        %1901 = vmatprep.mubr.f32.mxu0 0.0
        %1902 = vmatmul.mubr.f32.gmra.mrb[0].mxu0 %v1832
        %v1903 = vpop.f32.mrb[0].mxu0
        %v1904 = vadd.f32 0.0, %v1903
        %v1905 = vpop.f32.mrb[0].mxu0
        %1906 = vmatprep.mubr.f32.mxu0 0.0
        %1907 = vmatmul.mubr.f32.gmra.mrb[0].mxu0 %v1835
        %v1908 = vpop.f32.mrb[0].mxu0
        %v1909 = vadd.f32 0.0, %v1908
        %v1910 = vpop.f32.mrb[0].mxu0
        %1911 = vdwg.mxu0
        %v1912 = vadd.f32 %v1534, %v1904
        %v1913 = vadd.f32 %v1539, %v1909
        %1914 = vrot.lane.b32.xlu0 %v807, 104
        %v1915 = vpop.permute.xlu0 %1914
        %1916 = vrot.lane.b32.xlu0 %v812, 104
        %v1917 = vpop.permute.xlu0 %1916
        %1918 = vrot.lane.b32.xlu0 %v819, 104
        %v1919 = vpop.permute.xlu0 %1918
        %1920 = vrot.lane.b32.xlu0 %v820, 104
        %v1921 = vpop.permute.xlu0 %1920
        %1922 = vrot.lane.b32.xlu0 %v821, 104
        %v1923 = vpop.permute.xlu0 %1922
        %1924 = vrot.lane.b32.xlu0 %v822, 104
        %v1925 = vpop.permute.xlu0 %1924
        %1926 = vrot.lane.b32.xlu0 %v823, 104
        %v1927 = vpop.permute.xlu0 %1926
        %1928 = vrot.lane.b32.xlu0 %v824, 104
        %v1929 = vpop.permute.xlu0 %1928
        %1930 = vrot.lane.b32.xlu0 %v825, 104
        %v1931 = vpop.permute.xlu0 %1930
        %1932 = vrot.lane.b32.xlu0 %v826, 104
        %v1933 = vpop.permute.xlu0 %1932
        %1934 = vrot.lane.b32.xlu0 %v827, 104
        %v1935 = vpop.permute.xlu0 %1934
        %1936 = vrot.lane.b32.xlu0 %v828, 104
        %v1937 = vpop.permute.xlu0 %1936
        %1938 = vrot.lane.b32.xlu0 %v829, 104
        %v1939 = vpop.permute.xlu0 %1938
        %1940 = vrot.lane.b32.xlu0 %v830, 104
        %v1941 = vpop.permute.xlu0 %1940
        %1942 = vrot.lane.b32.xlu0 %v831, 104
        %v1943 = vpop.permute.xlu0 %1942
        %1944 = vrot.lane.b32.xlu0 %v832, 104
        %v1945 = vpop.permute.xlu0 %1944
        %1946 = vrot.lane.b32.xlu0 %v833, 104
        %v1947 = vpop.permute.xlu0 %1946
        %1948 = vrot.lane.b32.xlu0 %v834, 104
        %v1949 = vpop.permute.xlu0 %1948
        %v1950 = vsel %vm851, %v1915, 0
        %v1952 = vsel %vm851, %v1917, 0
        %v1954 = vsel %vm851, %v1919, 0
        %v1956 = vsel %vm851, %v1921, 0
        %v1958 = vsel %vm851, %v1923, 0
        %v1960 = vsel %vm851, %v1925, 0
        %v1962 = vsel %vm851, %v1927, 0
        %v1964 = vsel %vm851, %v1929, 0
        %v1966 = vsel %vm851, %v1931, 0
        %v1968 = vsel %vm851, %v1933, 0
        %v1970 = vsel %vm851, %v1935, 0
        %v1972 = vsel %vm851, %v1937, 0
        %v1974 = vsel %vm851, %v1939, 0
        %v1976 = vsel %vm851, %v1941, 0
        %v1978 = vsel %vm851, %v1943, 0
        %v1980 = vsel %vm851, %v1945, 0
        %v1982 = vsel %vm851, %v1947, 0
        %v1984 = vsel %vm851, %v1949, 0
        %1986 = vmatprep.subr.mxu0 0.0
        %1987 = vmatpush1.xpose.msra.mxu0 %v1954
        %1988 = vmatprep.subr.mxu0 0.0
        %1989 = vmatpush1.xpose.msra.mxu0 %v1956
        %1990 = vmatprep.subr.mxu0 0.0
        %1991 = vmatpush1.xpose.msra.mxu0 %v1958
        %1992 = vmatprep.subr.mxu0 0.0
        %1993 = vmatpush1.xpose.msra.mxu0 %v1960
        %1994 = vmatprep.subr.mxu0 0.0
        %1995 = vmatpush1.xpose.msra.mxu0 %v1962
        %1996 = vmatprep.subr.mxu0 0.0
        %1997 = vmatpush1.xpose.msra.mxu0 %v1964
        %1998 = vmatprep.subr.mxu0 0.0
        %1999 = vmatpush1.xpose.msra.mxu0 %v1966
        %2000 = vmatprep.subr.mxu0 0.0
        %2001 = vmatpush1.xpose.msra.mxu0 %v1968
        %2002 = vmatprep.subr.mxu0 0.0
        %2003 = vmatpush1.xpose.msra.mxu0 %v1970
        %2004 = vmatprep.subr.mxu0 0.0
        %2005 = vmatpush1.xpose.msra.mxu0 %v1972
        %2006 = vmatprep.subr.mxu0 0.0
        %2007 = vmatpush1.xpose.msra.mxu0 %v1974
        %2008 = vmatprep.subr.mxu0 0.0
        %2009 = vmatpush1.xpose.msra.mxu0 %v1976
        %2010 = vmatprep.subr.mxu0 0.0
        %2011 = vmatpush1.xpose.msra.mxu0 %v1978
        %2012 = vmatprep.subr.mxu0 0.0
        %2013 = vmatpush1.xpose.msra.mxu0 %v1980
        %2014 = vmatprep.subr.mxu0 0.0
        %2015 = vmatpush1.xpose.msra.mxu0 %v1982
        %2016 = vmatprep.subr.mxu0 0.0
        %2017 = vmatpush1.xpose.msra.mxu0 %v1984
        %2018 = vmatprep.subr.mxu0 0.0
        %2019 = vmatpush1.xpose.msra.mxu0 0.0
        %2020 = vmatprep.subr.mxu0 0.0
        %2021 = vmatpush1.xpose.msra.mxu0 0.0
        %2022 = vmatprep.subr.mxu0 0.0
        %2023 = vmatpush1.xpose.msra.mxu0 0.0
        %2024 = vmatprep.subr.mxu0 0.0
        %2025 = vmatpush1.xpose.msra.mxu0 0.0
        %2026 = vmatprep.subr.mxu0 0.0
        %2027 = vmatpush1.xpose.msra.mxu0 0.0
        %2028 = vmatprep.subr.mxu0 0.0
        %2029 = vmatpush1.xpose.msra.mxu0 0.0
        %2030 = vmatprep.subr.mxu0 0.0
        %2031 = vmatpush1.xpose.msra.mxu0 0.0
        %2032 = vmatprep.subr.mxu0 0.0
        %2033 = vmatpush1.xpose.msra.mxu0 0.0
        %2034 = vmatprep.subr.mxu0 0.0
        %2035 = vmatpush1.xpose.msra.mxu0 0.0
        %2036 = vmatprep.subr.mxu0 0.0
        %2037 = vmatpush1.xpose.msra.mxu0 0.0
        %2038 = vmatprep.subr.mxu0 0.0
        %2039 = vmatpush1.xpose.msra.mxu0 0.0
        %2040 = vmatprep.subr.mxu0 0.0
        %2041 = vmatpush1.xpose.msra.mxu0 0.0
        %2042 = vmatprep.subr.mxu0 0.0
        %2043 = vmatpush1.xpose.msra.mxu0 0.0
        %2044 = vmatprep.subr.mxu0 0.0
        %2045 = vmatpush1.xpose.msra.mxu0 0.0
        %2046 = vmatprep.subr.mxu0 0.0
        %2047 = vmatpush1.xpose.msra.mxu0 0.0
        %2048 = vmatprep.subr.mxu0 0.0
        %2049 = vmatpush1.xpose.msra.mxu0 0.0
        %2050 = vmatprep.mubr.f32.mxu0 0.0
        %2051 = vmatmul.mubr.f32.gmra.mrb[0].mxu0 %v1950
        %v2052 = vpop.f32.mrb[0].mxu0
        %v2053 = vadd.f32 %v818, %v2052
        %v2054 = vpop.f32.mrb[0].mxu0
        %2055 = vmatprep.mubr.f32.mxu0 0.0
        %2056 = vmatmul.mubr.f32.gmra.mrb[0].mxu0 %v1952
        %v2057 = vpop.f32.mrb[0].mxu0
        %v2058 = vadd.f32 %v818, %v2057
        %v2059 = vpop.f32.mrb[0].mxu0
        %2060 = vdwg.mxu0
        %2061 = vmax.xlane.f32.xlu0 %v2053
        %v2062 = vpop.xlane.xlu0 %2061
        %2063 = vmax.xlane.f32.xlu0 %v2058
        %v2064 = vpop.xlane.xlu0 %2063
        %v2065 = vsub.f32 %v2053, %v2062
        %v2066 = vsub.f32 %v2058, %v2064
        %v2067 = vmul.f32 %v2065, 1.442695
        %v2068 = vpow.pop %v2067
        %v2069 = vmul.f32 %v2066, 1.442695
        %v2070 = vpow.pop %v2069
        %2071 = vadd.xlane.f32.xlu0 %v2068
        %v2072 = vpop.xlane.xlu0 %2071
        %2073 = vadd.xlane.f32.xlu0 %v2070
        %v2074 = vpop.xlane.xlu0 %2073
        %2075 = vrot.lane.b32.xlu0 %v835, 104
        %v2076 = vpop.permute.xlu0 %2075
        %2077 = vrot.lane.b32.xlu0 %v836, 104
        %v2078 = vpop.permute.xlu0 %2077
        %2079 = vrot.lane.b32.xlu0 %v837, 104
        %v2080 = vpop.permute.xlu0 %2079
        %2081 = vrot.lane.b32.xlu0 %v838, 104
        %v2082 = vpop.permute.xlu0 %2081
        %2083 = vrot.lane.b32.xlu0 %v839, 104
        %v2084 = vpop.permute.xlu0 %2083
        %2085 = vrot.lane.b32.xlu0 %v840, 104
        %v2086 = vpop.permute.xlu0 %2085
        %2087 = vrot.lane.b32.xlu0 %v841, 104
        %v2088 = vpop.permute.xlu0 %2087
        %2089 = vrot.lane.b32.xlu0 %v842, 104
        %v2090 = vpop.permute.xlu0 %2089
        %2091 = vrot.lane.b32.xlu0 %v843, 104
        %v2092 = vpop.permute.xlu0 %2091
        %2093 = vrot.lane.b32.xlu0 %v844, 104
        %v2094 = vpop.permute.xlu0 %2093
        %2095 = vrot.lane.b32.xlu0 %v845, 104
        %v2096 = vpop.permute.xlu0 %2095
        %2097 = vrot.lane.b32.xlu0 %v846, 104
        %v2098 = vpop.permute.xlu0 %2097
        %2099 = vrot.lane.b32.xlu0 %v847, 104
        %v2100 = vpop.permute.xlu0 %2099
        %2101 = vrot.lane.b32.xlu0 %v848, 104
        %v2102 = vpop.permute.xlu0 %2101
        %2103 = vrot.lane.b32.xlu0 %v849, 104
        %v2104 = vpop.permute.xlu0 %2103
        %2105 = vrot.lane.b32.xlu0 %v850, 104
        %v2106 = vpop.permute.xlu0 %2105
        %2123 = vmatprep.subr.mxu0 0.0
        %2124 = vmatpush1.msra.mxu0 %v2076
        %2125 = vmatprep.subr.mxu0 0.0
        %2126 = vmatpush1.msra.mxu0 %v2078
        %2127 = vmatprep.subr.mxu0 0.0
        %2128 = vmatpush1.msra.mxu0 %v2080
        %2129 = vmatprep.subr.mxu0 0.0
        %2130 = vmatpush1.msra.mxu0 %v2082
        %2131 = vmatprep.subr.mxu0 0.0
        %2132 = vmatpush1.msra.mxu0 %v2084
        %2133 = vmatprep.subr.mxu0 0.0
        %2134 = vmatpush1.msra.mxu0 %v2086
        %2135 = vmatprep.subr.mxu0 0.0
        %2136 = vmatpush1.msra.mxu0 %v2088
        %2137 = vmatprep.subr.mxu0 0.0
        %2138 = vmatpush1.msra.mxu0 %v2090
        %2139 = vmatprep.subr.mxu0 0.0
        %2140 = vmatpush1.msra.mxu0 %v2092
        %2141 = vmatprep.subr.mxu0 0.0
        %2142 = vmatpush1.msra.mxu0 %v2094
        %2143 = vmatprep.subr.mxu0 0.0
        %2144 = vmatpush1.msra.mxu0 %v2096
        %2145 = vmatprep.subr.mxu0 0.0
        %2146 = vmatpush1.msra.mxu0 %v2098
        %2147 = vmatprep.subr.mxu0 0.0
        %2148 = vmatpush1.msra.mxu0 %v2100
        %2149 = vmatprep.subr.mxu0 0.0
        %2150 = vmatpush1.msra.mxu0 %v2102
        %2151 = vmatprep.subr.mxu0 0.0
        %2152 = vmatpush1.msra.mxu0 %v2104
        %2153 = vmatprep.subr.mxu0 0.0
        %2154 = vmatpush1.msra.mxu0 %v2106
        %2155 = vmatprep.subr.mxu0 0.0
        %2156 = vmatpush1.msra.mxu0 0.0
        %2157 = vmatprep.subr.mxu0 0.0
        %2158 = vmatpush1.msra.mxu0 0.0
        %2159 = vmatprep.subr.mxu0 0.0
        %2160 = vmatpush1.msra.mxu0 0.0
        %2161 = vmatprep.subr.mxu0 0.0
        %2162 = vmatpush1.msra.mxu0 0.0
        %2163 = vmatprep.subr.mxu0 0.0
        %2164 = vmatpush1.msra.mxu0 0.0
        %2165 = vmatprep.subr.mxu0 0.0
        %2166 = vmatpush1.msra.mxu0 0.0
        %2167 = vmatprep.subr.mxu0 0.0
        %2168 = vmatpush1.msra.mxu0 0.0
        %2169 = vmatprep.subr.mxu0 0.0
        %2170 = vmatpush1.msra.mxu0 0.0
        %2171 = vmatprep.subr.mxu0 0.0
        %2172 = vmatpush1.msra.mxu0 0.0
        %2173 = vmatprep.subr.mxu0 0.0
        %2174 = vmatpush1.msra.mxu0 0.0
        %2175 = vmatprep.subr.mxu0 0.0
        %2176 = vmatpush1.msra.mxu0 0.0
        %2177 = vmatprep.subr.mxu0 0.0
        %2178 = vmatpush1.msra.mxu0 0.0
        %2179 = vmatprep.subr.mxu0 0.0
        %2180 = vmatpush1.msra.mxu0 0.0
        %2181 = vmatprep.subr.mxu0 0.0
        %2182 = vmatpush1.msra.mxu0 0.0
        %2183 = vmatprep.subr.mxu0 0.0
        %2184 = vmatpush1.msra.mxu0 0.0
        %2185 = vmatprep.subr.mxu0 0.0
        %2186 = vmatpush1.msra.mxu0 0.0
        %2187 = vmatprep.mubr.f32.mxu0 0.0
        %2188 = vmatmul.mubr.f32.gmra.mrb[0].mxu0 %v2068
        %v2189 = vpop.f32.mrb[0].mxu0
        %v2190 = vadd.f32 0.0, %v2189
        %v2191 = vpop.f32.mrb[0].mxu0
        %2192 = vmatprep.mubr.f32.mxu0 0.0
        %2193 = vmatmul.mubr.f32.gmra.mrb[0].mxu0 %v2070
        %v2194 = vpop.f32.mrb[0].mxu0
        %v2195 = vadd.f32 0.0, %v2194
        %v2196 = vpop.f32.mrb[0].mxu0
        %2197 = vdwg.mxu0
        %v2198 = vrcp.pop %v2072
        %v2199 = vmul.f32 %v2190, %v2198
        %v2200 = vrcp.pop %v2074
        %v2201 = vmul.f32 %v2195, %v2200
        %v2202 = vld [vmem:[%s5 + $0x18] sm:$0xff]
        %v2204 = vsel %vm851, %v2199, 0
        %v2207 = vsel %vm851, %v2201, 0
        %2209 = vmatprep.subr.mxu0 0.0
        %2210 = vmatpush1.msra.mxu0 %v2202
        %2211 = vmatprep.subr.mxu0 0.0
        %2212 = vmatpush1.msra.mxu0 0.0
        %2213 = vmatprep.subr.mxu0 0.0
        %2214 = vmatpush1.msra.mxu0 0.0
        %2215 = vmatprep.subr.mxu0 0.0
        %2216 = vmatpush1.msra.mxu0 0.0
        %2217 = vmatprep.subr.mxu0 0.0
        %2218 = vmatpush1.msra.mxu0 0.0
        %2219 = vmatprep.subr.mxu0 0.0
        %2220 = vmatpush1.msra.mxu0 0.0
        %2221 = vmatprep.subr.mxu0 0.0
        %2222 = vmatpush1.msra.mxu0 0.0
        %2223 = vmatprep.subr.mxu0 0.0
        %2224 = vmatpush1.msra.mxu0 0.0
        %2225 = vmatprep.subr.mxu0 0.0
        %2226 = vmatpush1.msra.mxu0 0.0
        %2227 = vmatprep.subr.mxu0 0.0
        %2228 = vmatpush1.msra.mxu0 0.0
        %2229 = vmatprep.subr.mxu0 0.0
        %2230 = vmatpush1.msra.mxu0 0.0
        %2231 = vmatprep.subr.mxu0 0.0
        %2232 = vmatpush1.msra.mxu0 0.0
        %2233 = vmatprep.subr.mxu0 0.0
        %2234 = vmatpush1.msra.mxu0 0.0
        %2235 = vmatprep.subr.mxu0 0.0
        %2236 = vmatpush1.msra.mxu0 0.0
        %2237 = vmatprep.subr.mxu0 0.0
        %2238 = vmatpush1.msra.mxu0 0.0
        %2239 = vmatprep.subr.mxu0 0.0
        %2240 = vmatpush1.msra.mxu0 0.0
        %2241 = vmatprep.subr.mxu0 0.0
        %2242 = vmatpush1.msra.mxu0 0.0
        %2243 = vmatprep.subr.mxu0 0.0
        %2244 = vmatpush1.msra.mxu0 0.0
        %2245 = vmatprep.subr.mxu0 0.0
        %2246 = vmatpush1.msra.mxu0 0.0
        %2247 = vmatprep.subr.mxu0 0.0
        %2248 = vmatpush1.msra.mxu0 0.0
        %2249 = vmatprep.subr.mxu0 0.0
        %2250 = vmatpush1.msra.mxu0 0.0
        %2251 = vmatprep.subr.mxu0 0.0
        %2252 = vmatpush1.msra.mxu0 0.0
        %2253 = vmatprep.subr.mxu0 0.0
        %2254 = vmatpush1.msra.mxu0 0.0
        %2255 = vmatprep.subr.mxu0 0.0
        %2256 = vmatpush1.msra.mxu0 0.0
        %2257 = vmatprep.subr.mxu0 0.0
        %2258 = vmatpush1.msra.mxu0 0.0
        %2259 = vmatprep.subr.mxu0 0.0
        %2260 = vmatpush1.msra.mxu0 0.0
        %2261 = vmatprep.subr.mxu0 0.0
        %2262 = vmatpush1.msra.mxu0 0.0
        %2263 = vmatprep.subr.mxu0 0.0
        %2264 = vmatpush1.msra.mxu0 0.0
        %2265 = vmatprep.subr.mxu0 0.0
        %2266 = vmatpush1.msra.mxu0 0.0
        %2267 = vmatprep.subr.mxu0 0.0
        %2268 = vmatpush1.msra.mxu0 0.0
        %2269 = vmatprep.subr.mxu0 0.0
        %2270 = vmatpush1.msra.mxu0 0.0
        %2271 = vmatprep.subr.mxu0 0.0
        %2272 = vmatpush1.msra.mxu0 0.0
        %2273 = vmatprep.mubr.f32.mxu0 0.0
        %2274 = vmatmul.mubr.f32.gmra.mrb[0].mxu0 %v2204
        %v2275 = vpop.f32.mrb[0].mxu0
        %v2276 = vadd.f32 0.0, %v2275
        %v2277 = vpop.f32.mrb[0].mxu0
        %2278 = vmatprep.mubr.f32.mxu0 0.0
        %2279 = vmatmul.mubr.f32.gmra.mrb[0].mxu0 %v2207
        %v2280 = vpop.f32.mrb[0].mxu0
        %v2281 = vadd.f32 0.0, %v2280
        %v2282 = vpop.f32.mrb[0].mxu0
        %2283 = vdwg.mxu0
        %v2284 = vadd.f32 %v1912, %v2276
        %v2285 = vadd.f32 %v1913, %v2281
        %v2286 = vld [vmem:[%s6] sm:$0x1]
        %v2288 = vlaneseq
        %v2289 = vshrl.u32 %v2288, 7
        %v2290 = vsub.s32 0, %v2289
        %v2291 = vrot.slane %v2286, %v2290
        %v2293 = vadd.f32 %v2284, %v2291
        %v2294 = vadd.f32 %v2285, %v2291
        %2295 = vst [vmem:[%s311] sm:$0xff] %v2293
        %2296 = vst [vmem:[%s311 + $0x8] sm:$0xff] %v2294
        %s2297 = sand.u32 %s202, 1
        %s2298 = scalar_lea.sflag [#allocation5], %s2297
        %s2299 = sand.u32 %s202, 1
        %s2300 = smul.addr %s2299, 16
        %s2301 = scalar_lea.vmem [#allocation4], %s2300
        // Predicated region
        $region53: #{tpu_custom_call.1} parent=47 // pred_check
          %p2302 = pneg %p212
        $region54: #{tpu_custom_call.1} parent=47 // pred_check_branch
          %2304 = sbr.rel (%p2302) target = $region56
        $region55: #{tpu_custom_call.1} parent=47 // pred_region
          %s2305 = smul.u32 2, %s26
          %s2307 = ssub.s32 256, 256
          %2308 = vsyncadd %s2298, %s2307
          %s2309 = smul.addr %s25, 2
          %s2310 = sadd.s32 %s2305, %s2309
          %s2311 = smul.addr %s2310, 128
          %s2312 = scalar_lea.hbm %s7, %s2311
          %s2313 = sshll.u32 %s2301, 4
          %s2314 = int_to_ptr.vmem [resolvable:$true] %s2313
          %2319 = dma.vmem_to_hbm [thread:$0]  %s2314, 256, %s2312, %s2298, 128, 128, 8
        $region56: #{tpu_custom_call.1} parent=47 // pred_fallthru
          _
      $region48: #{tpu_custom_call.1} parent=5 // pred_fallthru
        _
      %p2320 = scmp.le.s32.totalorder 2, %s16
      // Predicated region
      $region57: #{tpu_custom_call.1} parent=5 // pred_check
        %p2321 = pneg %p2320
      $region58: #{tpu_custom_call.1} parent=5 // pred_check_branch
        %2323 = sbr.rel (%p2321) target = $region60
      $region59: #{tpu_custom_call.1} parent=5 // pred_region
        %s2324 = ssub.s32 %s16, 2
        // Predicated region
        $region61: #{tpu_custom_call.1} parent=59 // pred_check
          %p2325 = pneg %p218
        $region62: #{tpu_custom_call.1} parent=59 // pred_check_branch
          %2327 = sbr.rel (%p2325) target = $region64
        $region63: #{tpu_custom_call.1} parent=59 // pred_region
          %s2328 = sand.u32 %s203, 1
          %s2329 = scalar_lea.sflag [#allocation5], %s2328
          %s2330 = sand.u32 %s203, 1
          %s2331 = smul.addr %s2330, 16
          %s2332 = scalar_lea.vmem [#allocation4], %s2331
          %2333 = dma.done %s2329, 256
        $region64: #{tpu_custom_call.1} parent=59 // pred_fallthru
          _
      $region60: #{tpu_custom_call.1} parent=5 // pred_fallthru
        _
    $region6: #{tpu_custom_call.1} parent=1 // loop_footer
      %s20 = sadd.s32 1, %s16
    $region7: #{tpu_custom_call.1} parent=1 // loop_footer_branch
      %15 = sbr.rel target = $region3
    $region8: #{tpu_custom_call.1} parent=1 // loop_exit
      _
    %2334 = vsyncpa [#allocation5], 1
    %s2335 = scalar_lea.sflag [#allocation5], 1
    %2336 = vsyncpa %s2335, 1

</llo_original>
